<compile_context>
chip_gen: v7x
topology: tpu7x:2x2x1
jax: 0.10.0
libtpu: 0.0.40
codegen_flags: <defaults>
</compile_context>

<pallas_src>
import functools

import jax
import jax.numpy as jnp
from jax import lax
from jax.experimental import pallas as pl
from jax.experimental.pallas import tpu as pltpu

LANE = 128
SUBLANE = 8


def _round_up(x, m):
    return (x + m - 1) // m * m


def _repvgg_kernel(x_ref, w_ref, b_ref, o_ref, *, tile_h):
    # x_ref : (1, H_p + 2, W_p + 2, Cin_p)  bf16  haloed, zero-padded input (full image)
    # w_ref : (3, 3 * Cin_p, tCout)         bf16  fused 3x3 kernel, dy-major, (dx, cin) on K
    # b_ref : (1, tCout)                    f32   fused bias
    # o_ref : (1, H_p, W_p, tCout)                output (lane-dense channels)
    h_p = o_ref.shape[1]
    w_p = o_ref.shape[2]
    t_cout = o_ref.shape[3]
    k3cin = w_ref.shape[1]
    bias = b_ref[...]                                        # (1, tCout) f32

    # Static in-kernel loop over row chunks: bounds the im2col patch + f32 accumulator
    # in VMEM while keeping each chunk's M = tile_h * W_p large.
    for r in range(h_p // tile_h):
        r0 = r * tile_h
        rows = x_ref[0, r0:r0 + tile_h + 2, :, :]            # (tH+2, W_p+2, Cin_p) bf16

        # im2col over dx, built ONCE per chunk (hoisted out of the dy loop): the three
        # dx-shifted windows are concatenated along the lane (channel) axis.
        patch = jnp.concatenate(
            [rows[:, 0:w_p, :], rows[:, 1:w_p + 1, :], rows[:, 2:w_p + 2, :]],
            axis=-1)                                         # (tH+2, W_p, 3*Cin_p) bf16

        # 3 MXU matmuls (one per kernel row dy), K = 3*Cin_p; dy slices only the cheap
        # leading dim.  Accumulate in a local f32 value (no VMEM scratch round-trips).
        acc = None
        for dy in range(3):
            blk = patch[dy:dy + tile_h].reshape(tile_h * w_p, k3cin)
            part = jnp.dot(blk, w_ref[dy], preferred_element_type=jnp.float32)
            acc = part if acc is None else acc + part

        y = jnp.maximum(acc + bias, 0.0)                     # bias + ReLU in f32
        o_ref[0, r0:r0 + tile_h, :, :] = (
            y.reshape(tile_h, w_p, t_cout).astype(o_ref.dtype))


@functools.partial(jax.jit, static_argnames=("row_tile", "cout_tile"))
def repvgg_pallas(x_nchw, w_eq_oihw, b_eq, *, row_tile=64, cout_tile=None):
    """Fused RepVggBlock forward (deploy form): ReLU(conv3x3_eq(x) + b_eq).

    x_nchw: (N, Cin, H, W); w_eq_oihw: (Cout, Cin, 3, 3); b_eq: (Cout,).
    Returns (N, Cout, H, W) in x_nchw.dtype.
    """
    N, Cin, H, W = x_nchw.shape
    Cout = w_eq_oihw.shape[0]
    out_dtype = x_nchw.dtype

    Cin_p = _round_up(Cin, LANE)
    Cout_p = _round_up(Cout, LANE)
    W_p = _round_up(W, SUBLANE)          # sublane-aligned rows -> free (tH,W,K)->(tH*W,K) reshape
    tH = max(1, min(row_tile, H))
    H_p = _round_up(H, tH)

    if cout_tile is None:
        w_bytes = 3 * 3 * Cin_p * Cout_p * 2
        if w_bytes <= 8 * 1024 * 1024:
            cout_tile = Cout_p           # whole fused weight stays VMEM-resident (n_cout = 1)
        elif Cout_p % 256 == 0:
            cout_tile = 256              # v6e/v7x MXU is 256 wide; pass cout_tile=128 on v5e
        else:
            cout_tile = LANE
    if Cout_p % cout_tile != 0:
        cout_tile = LANE
    n_cout = Cout_p // cout_tile

    # NCHW -> NHWC, lane-pad channels to 128, halo-pad H/W (+ alignment padding), bf16.
    # TODO(synk): accept NHWC in / emit NHWC (and optionally bf16) out so these wrapper
    # transposes and the final slice don't cost extra HBM passes.
    x = jnp.transpose(x_nchw, (0, 2, 3, 1)).astype(jnp.bfloat16)
    x = jnp.pad(x, ((0, 0),
                    (1, 1 + (H_p - H)),
                    (1, 1 + (W_p - W)),
                    (0, Cin_p - Cin)))

    # Fused 3x3 kernel: OIHW -> (dy, dx, cin, cout), lane-pad, flatten (dx, cin) -> K.
    # TODO(synk): for tiny-Cin layers, flatten (dy,dx,cin) into a single K padded once
    # to 128 (one matmul) instead of padding Cin to 128 per dx.
    w = jnp.transpose(w_eq_oihw, (2, 3, 1, 0))
    w = jnp.pad(w, ((0, 0), (0, 0), (0, Cin_p - Cin), (0, Cout_p - Cout)))
    w = w.astype(jnp.bfloat16).reshape(3, 3 * Cin_p, Cout_p)

    b = jnp.pad(b_eq.astype(jnp.float32), (0, Cout_p - Cout)).reshape(1, Cout_p)

    kernel = functools.partial(_repvgg_kernel, tile_h=tH)

    # Grid: Cout tiles slowest -> weight block DMA'd only n_cout times; input streamed
    # straight from the padded NHWC array (no overlapping-tile materialization).
    # TODO(synk): with N == 1 and n_cout == 1 there is no leading parallel axis for the
    # v7x megacore split; fold a coarse row split into the grid if that case matters.
    out = pl.pallas_call(
        kernel,
        out_shape=jax.ShapeDtypeStruct((N, H_p, W_p, Cout_p), out_dtype),
        grid=(n_cout, N),
        in_specs=[
            pl.BlockSpec((1, H_p + 2, W_p + 2, Cin_p), lambda c, n: (n, 0, 0, 0)),
            pl.BlockSpec((3, 3 * Cin_p, cout_tile), lambda c, n: (0, 0, c)),
            pl.BlockSpec((1, cout_tile), lambda c, n: (0, c)),
        ],
        out_specs=pl.BlockSpec((1, H_p, W_p, cout_tile), lambda c, n: (n, 0, 0, c)),
        compiler_params=pltpu.CompilerParams(
            dimension_semantics=("parallel", "parallel"),
            # ~48 MB is safe on v7x's 64 MiB VMEM; can be raised toward ~96 MB on
            # v5e/v6e (128 MiB) to take larger row_tile at production shapes.
            vmem_limit_bytes=48 * 1024 * 1024),
    )(x, w, b)

    out = out[:, :H, :W, :Cout]                  # drop row / col / channel padding
    return jnp.transpose(out, (0, 3, 1, 2))      # back to NCHW


# ----------------------- parameter setup (plain JAX glue) -----------------------

def fuse_bn(w_oihw, gamma, beta, running_mean, running_var, eps=1e-5):
    """Fold eval-mode BatchNorm2d into conv weights (== RepVggBlock._fuse_bn_tensor)."""
    std = jnp.sqrt(running_var + eps)
    t = (gamma / std).reshape(-1, 1, 1, 1)
    return w_oihw * t, beta - running_mean * gamma / std


def make_params(key, ch_in, ch_out):
    ks = jax.random.split(key, 10)
    w3 = jax.random.normal(ks[0], (ch_out, ch_in, 3, 3), jnp.float32) * 0.1
    w1 = jax.random.normal(ks[1], (ch_out, ch_in, 1, 1), jnp.float32) * 0.1
    g3 = 1.0 + 0.1 * jax.random.normal(ks[2], (ch_out,), jnp.float32)
    b3 = 0.1 * jax.random.normal(ks[3], (ch_out,), jnp.float32)
    m3 = 0.05 * jax.random.normal(ks[4], (ch_out,), jnp.float32)
    v3 = 1.0 + 0.1 * jax.random.uniform(ks[5], (ch_out,), jnp.float32)
    g1 = 1.0 + 0.1 * jax.random.normal(ks[6], (ch_out,), jnp.float32)
    b1 = 0.1 * jax.random.normal(ks[7], (ch_out,), jnp.float32)
    m1 = 0.05 * jax.random.normal(ks[8], (ch_out,), jnp.float32)
    v1 = 1.0 + 0.1 * jax.random.uniform(ks[9], (ch_out,), jnp.float32)

    k3, bias3 = fuse_bn(w3, g3, b3, m3, v3)
    k1, bias1 = fuse_bn(w1, g1, b1, m1, v1)
    k1_padded = jnp.pad(k1, ((0, 0), (0, 0), (1, 1), (1, 1)))   # 1x1 -> 3x3 (center)
    return k3 + k1_padded, bias3 + bias1


def reference(x_nchw, w_eq_oihw, b_eq):
    # Same bf16 operand rounding as the kernel; conv/bias/ReLU math in f32.
    xb = x_nchw.astype(jnp.bfloat16).astype(jnp.float32)
    wb = w_eq_oihw.astype(jnp.bfloat16).astype(jnp.float32)
    y = lax.conv_general_dilated(
        xb, wb, window_strides=(1, 1), padding=((1, 1), (1, 1)),
        dimension_numbers=("NCHW", "OIHW", "NCHW"))
    y = y + b_eq.reshape(1, -1, 1, 1)
    return jnp.maximum(y, 0.0)


if __name__ == "__main__":
    key = jax.random.PRNGKey(0)
    k_x, k_p = jax.random.split(key)

    N, C_IN, C_OUT, H, W = 2, 4, 8, 16, 16
    x = jax.random.normal(k_x, (N, C_IN, H, W), jnp.float32)
    w_eq, b_eq = make_params(k_p, C_IN, C_OUT)

    out = repvgg_pallas(x, w_eq, b_eq)
    out = jax.block_until_ready(out)

    ref = reference(x, w_eq, b_eq)
    assert out.shape == (N, C_OUT, H, W)
    assert jnp.allclose(out, ref, atol=2e-3, rtol=2e-3), float(jnp.max(jnp.abs(out - ref)))
    print("KERNEL_OK")
</pallas_src>

<mosaic_0001>
module attributes {stable_mosaic.version = 11 : i64} {
  func.func @_repvgg_kernel(%arg0: i32, %arg1: i32, %arg2: memref<1x18x18x128xbf16, #tpu.memory_space<vmem>>, %arg3: memref<3x384x128xbf16, #tpu.memory_space<vmem>>, %arg4: memref<1x128xf32, #tpu.memory_space<vmem>>, %arg5: memref<1x16x16x128xf32, #tpu.memory_space<vmem>>) attributes {dimension_semantics = [#tpu.dimension_semantics<parallel>, #tpu.dimension_semantics<parallel>], iteration_bounds = array<i64: 1, 2>, scalar_prefetch = 0 : i64, scratch_operands = 0 : i64, tpu.core_type = #tpu.core_type<tc>, window_params = [{transform_indices = @transform_0, window_bounds = array<i64: 1, 18, 18, 128>}, {transform_indices = @transform_1, window_bounds = array<i64: 3, 384, 128>}, {transform_indices = @transform_2, window_bounds = array<i64: 1, 128>}, {transform_indices = @transform_3, window_bounds = array<i64: 1, 16, 16, 128>}]} {
    %c0 = arith.constant 0 : index
    %c0_0 = arith.constant 0 : index
    %0 = vector.load %arg4[%c0, %c0_0] : memref<1x128xf32, #tpu.memory_space<vmem>>, vector<1x128xf32>
    %c0_1 = arith.constant 0 : index
    %c0_2 = arith.constant 0 : index
    %c0_3 = arith.constant 0 : index
    %c0_4 = arith.constant 0 : index
    %1 = vector.load %arg2[%c0_1, %c0_2, %c0_3, %c0_4] : memref<1x18x18x128xbf16, #tpu.memory_space<vmem>>, vector<1x18x18x128xbf16>
    %2 = vector.shape_cast %1 : vector<1x18x18x128xbf16> to vector<18x18x128xbf16>
    %3 = vector.extract_strided_slice %2 {offsets = [0, 0, 0], sizes = [18, 16, 128], strides = [1, 1, 1]} : vector<18x18x128xbf16> to vector<18x16x128xbf16>
    %4 = vector.extract_strided_slice %2 {offsets = [0, 1, 0], sizes = [18, 16, 128], strides = [1, 1, 1]} : vector<18x18x128xbf16> to vector<18x16x128xbf16>
    %5 = vector.extract_strided_slice %2 {offsets = [0, 2, 0], sizes = [18, 16, 128], strides = [1, 1, 1]} : vector<18x18x128xbf16> to vector<18x16x128xbf16>
    %6 = tpu.concatenate %3, %4, %5 in 2 : vector<18x16x128xbf16>, vector<18x16x128xbf16>, vector<18x16x128xbf16> -> vector<18x16x384xbf16>
    %7 = vector.extract_strided_slice %6 {offsets = [0, 0, 0], sizes = [16, 16, 384], strides = [1, 1, 1]} : vector<18x16x384xbf16> to vector<16x16x384xbf16>
    %8 = vector.shape_cast %7 : vector<16x16x384xbf16> to vector<256x384xbf16>
    %c0_5 = arith.constant 0 : index
    %c0_6 = arith.constant 0 : index
    %c0_7 = arith.constant 0 : index
    %9 = vector.load %arg3[%c0_5, %c0_6, %c0_7] : memref<3x384x128xbf16, #tpu.memory_space<vmem>>, vector<1x384x128xbf16>
    %10 = vector.shape_cast %9 : vector<1x384x128xbf16> to vector<384x128xbf16>
    %cst = arith.constant dense<0.000000e+00> : vector<256x128xf32>
    %11 = tpu.matmul %8, %10, %cst {dimension_numbers = #tpu.dot_dimension_numbers<[1], [0], [0], [1], [0, 0, 1, 1], [], []>} : vector<256x384xbf16>, vector<384x128xbf16>, vector<256x128xf32> -> vector<256x128xf32>
    %12 = vector.extract_strided_slice %6 {offsets = [1, 0, 0], sizes = [16, 16, 384], strides = [1, 1, 1]} : vector<18x16x384xbf16> to vector<16x16x384xbf16>
    %13 = vector.shape_cast %12 : vector<16x16x384xbf16> to vector<256x384xbf16>
    %c1 = arith.constant 1 : index
    %c0_8 = arith.constant 0 : index
    %c0_9 = arith.constant 0 : index
    %14 = vector.load %arg3[%c1, %c0_8, %c0_9] : memref<3x384x128xbf16, #tpu.memory_space<vmem>>, vector<1x384x128xbf16>
    %15 = vector.shape_cast %14 : vector<1x384x128xbf16> to vector<384x128xbf16>
    %cst_10 = arith.constant dense<0.000000e+00> : vector<256x128xf32>
    %16 = tpu.matmul %13, %15, %cst_10 {dimension_numbers = #tpu.dot_dimension_numbers<[1], [0], [0], [1], [0, 0, 1, 1], [], []>} : vector<256x384xbf16>, vector<384x128xbf16>, vector<256x128xf32> -> vector<256x128xf32>
    %17 = arith.addf %11, %16 : vector<256x128xf32>
    %18 = vector.extract_strided_slice %6 {offsets = [2, 0, 0], sizes = [16, 16, 384], strides = [1, 1, 1]} : vector<18x16x384xbf16> to vector<16x16x384xbf16>
    %19 = vector.shape_cast %18 : vector<16x16x384xbf16> to vector<256x384xbf16>
    %c2 = arith.constant 2 : index
    %c0_11 = arith.constant 0 : index
    %c0_12 = arith.constant 0 : index
    %20 = vector.load %arg3[%c2, %c0_11, %c0_12] : memref<3x384x128xbf16, #tpu.memory_space<vmem>>, vector<1x384x128xbf16>
    %21 = vector.shape_cast %20 : vector<1x384x128xbf16> to vector<384x128xbf16>
    %cst_13 = arith.constant dense<0.000000e+00> : vector<256x128xf32>
    %22 = tpu.matmul %19, %21, %cst_13 {dimension_numbers = #tpu.dot_dimension_numbers<[1], [0], [0], [1], [0, 0, 1, 1], [], []>} : vector<256x384xbf16>, vector<384x128xbf16>, vector<256x128xf32> -> vector<256x128xf32>
    %23 = arith.addf %17, %22 : vector<256x128xf32>
    %24 = vector.broadcast %0 : vector<1x128xf32> to vector<256x128xf32>
    %25 = arith.addf %23, %24 : vector<256x128xf32>
    %cst_14 = arith.constant 0.000000e+00 : f32
    %26 = vector.broadcast %cst_14 : f32 to vector<256x128xf32>
    %27 = arith.maximumf %25, %26 : vector<256x128xf32>
    %28 = vector.shape_cast %27 : vector<256x128xf32> to vector<16x16x128xf32>
    %c0_15 = arith.constant 0 : index
    %c0_16 = arith.constant 0 : index
    %c0_17 = arith.constant 0 : index
    %c0_18 = arith.constant 0 : index
    %29 = vector.load %arg5[%c0_15, %c0_16, %c0_17, %c0_18] : memref<1x16x16x128xf32, #tpu.memory_space<vmem>>, vector<1x16x16x128xf32>
    %30 = vector.shape_cast %29 : vector<1x16x16x128xf32> to vector<16x16x128xf32>
    %31 = vector.shape_cast %28 : vector<16x16x128xf32> to vector<1x16x16x128xf32>
    tpu.vector_store %arg5[%c0_15, %c0_16, %c0_17, %c0_18], %31 {strides = array<i32>} : memref<1x16x16x128xf32, #tpu.memory_space<vmem>>, vector<1x16x16x128xf32>,
    return
  }
  func.func @transform_0(%arg0: i32, %arg1: i32) -> (i32, i32, i32, i32) {
    %c0_i32 = arith.constant 0 : i32
    %c0_i32_0 = arith.constant 0 : i32
    %c0_i32_1 = arith.constant 0 : i32
    %c0_i32_2 = arith.constant 0 : i32
    return %arg1, %c0_i32, %c0_i32_0, %c0_i32_1 : i32, i32, i32, i32
  }
  func.func @transform_1(%arg0: i32, %arg1: i32) -> (i32, i32, i32) {
    %c0_i32 = arith.constant 0 : i32
    %c0_i32_0 = arith.constant 0 : i32
    %c0_i32_1 = arith.constant 0 : i32
    return %c0_i32, %c0_i32_0, %arg0 : i32, i32, i32
  }
  func.func @transform_2(%arg0: i32, %arg1: i32) -> (i32, i32) {
    %c0_i32 = arith.constant 0 : i32
    %c0_i32_0 = arith.constant 0 : i32
    return %c0_i32, %arg0 : i32, i32
  }
  func.func @transform_3(%arg0: i32, %arg1: i32) -> (i32, i32, i32, i32) {
    %c0_i32 = arith.constant 0 : i32
    %c0_i32_0 = arith.constant 0 : i32
    %c0_i32_1 = arith.constant 0 : i32
    return %arg1, %c0_i32, %c0_i32_0, %arg0 : i32, i32, i32, i32
  }
}

</mosaic_0001>

<llo_original>
// kernel: repvgg_pallas.1
$region0: #{repvgg_pallas.1}
  #allocation0 [shape = 'u32[]', space=smem, size = 0x4, offset = 0x4, fixed_abs, tag = 'smem constant byte address 0x4 - core index']
  #allocation1 [shape = 'u32[144,128]{1,0:T(1,128)}', space=vmem, size = 0x12000, scoped, tag = 'internal scratch']
  %s0 = inlined_call_operand.vmem [shape: bf16[2,18,18,128], index: 0, kind: input, shape index: {}]
  %s1 = inlined_call_operand.vmem [shape: bf16[3,384,128], index: 1, kind: input, shape index: {}]
  %s2 = inlined_call_operand.vmem [shape: f32[1,128], index: 2, kind: input, shape index: {}]
  %s3 = inlined_call_operand.vmem [shape: f32[2,16,16,128], index: 3, kind: output, shape index: {}]
  %s4 = sld [smem:[#allocation0]]
  $region45: #{repvgg_pallas.1} parent=0
    _
  %s6 = ssub.s32 1, %s4
  %s7 = scalar_select 0, %s6, %s4
  loop: start=0, step=1, limit=4
  $region2: #{repvgg_pallas.1} parent=0 // loop_pre_header
    _
  $region3: #{repvgg_pallas.1} parent=0 // loop_header
    %s9 = sphi 0, %s13
    %p10 = scmp.ge.s32.totalorder %s9, 4
    %s16 = sphi 0, %s28
    %s17 = sphi 0, %s24
    %s18 = sphi 0, %s16
    %s19 = sphi 0, %s17
    %s20 = sphi 0, %s18
    %s21 = sphi 0, %s19
    %s31 = sphi 0, %s33
    %s34 = sphi 0, %s31
    %s35 = sphi 0, %s34
    %s51 = sphi 0, %s35
    %s57 = sphi 0, %s59
    %s60 = sphi 0, %s57
    %s61 = sphi 0, %s60
    %s77 = sphi 0, %s61
    %s83 = sphi 0, %s85
    %s86 = sphi 0, %s83
    %s87 = sphi 0, %s86
    %s103 = sphi 0, %s87
    %s111 = sphi 0, %s113
    %s114 = sphi 0, %s111
    %s115 = sphi 0, %s114
    %s131 = sphi 0, %s115
  $region4: #{repvgg_pallas.1} parent=0 // loop_header_branch
    %12 = sbr.rel (%p10) target = $region8
  $region5: #{repvgg_pallas.1} parent=0 // loop_body
    %s14 = ssub.s32 %s9, 1
    %s15 = ssub.s32 %s9, 2
    %s22 = sadd.s32 1, %s17
    %p23 = scmp.ge.s32.totalorder %s22, 2
    %s24 = scalar_select %p23, 0, %s22
    %s25 = sadd.s32 1, %s16
    %s26 = scalar_select %p23, %s25, %s16
    %p27 = scmp.ge.s32.totalorder %s26, 1
    %s28 = scalar_select %p27, 0, %s26
    %s29 = ssub.s32 %s17, %s24
    %p30 = scmp.eq.s32.totalorder %s29, 0
    %s32 = sadd.s32 %s31, 1
    %s33 = scalar_select %p30, %s31, %s32
    %p36 = pneg %p30
    %p37 = scmp.eq.s32.totalorder %s9, 1
    %p38 = por %p36, %p37
    %p39 = scmp.ne.s32.totalorder %s31, %s34
    %p40 = scmp.eq.s32.totalorder %s9, 0
    %p41 = por %p39, %p40
    %p42 = scmp.ne.s32.totalorder %s31, %s34
    %p43 = scmp.eq.s32.totalorder %s14, 1
    %p44 = por %p42, %p43
    %p45 = scmp.ne.s32.totalorder %s34, %s35
    %p46 = scmp.eq.s32.totalorder %s14, 0
    %p47 = por %p45, %p46
    %p48 = scmp.ne.s32.totalorder %s34, %s35
    %p49 = scmp.eq.s32.totalorder %s15, 1
    %p50 = por %p48, %p49
    %p52 = scmp.ne.s32.totalorder %s35, %s51
    %p53 = scmp.eq.s32.totalorder %s15, 0
    %p54 = por %p52, %p53
    %s55 = ssub.s32 %s16, %s28
    %p56 = scmp.eq.s32.totalorder %s55, 0
    %s58 = sadd.s32 %s57, 1
    %s59 = scalar_select %p56, %s57, %s58
    %p62 = pneg %p56
    %p63 = scmp.eq.s32.totalorder %s9, 1
    %p64 = por %p62, %p63
    %p65 = scmp.ne.s32.totalorder %s57, %s60
    %p66 = scmp.eq.s32.totalorder %s9, 0
    %p67 = por %p65, %p66
    %p68 = scmp.ne.s32.totalorder %s57, %s60
    %p69 = scmp.eq.s32.totalorder %s14, 1
    %p70 = por %p68, %p69
    %p71 = scmp.ne.s32.totalorder %s60, %s61
    %p72 = scmp.eq.s32.totalorder %s14, 0
    %p73 = por %p71, %p72
    %p74 = scmp.ne.s32.totalorder %s60, %s61
    %p75 = scmp.eq.s32.totalorder %s15, 1
    %p76 = por %p74, %p75
    %p78 = scmp.ne.s32.totalorder %s61, %s77
    %p79 = scmp.eq.s32.totalorder %s15, 0
    %p80 = por %p78, %p79
    %s81 = ssub.s32 %s16, %s28
    %p82 = scmp.eq.s32.totalorder %s81, 0
    %s84 = sadd.s32 %s83, 1
    %s85 = scalar_select %p82, %s83, %s84
    %p88 = pneg %p82
    %p89 = scmp.eq.s32.totalorder %s9, 1
    %p90 = por %p88, %p89
    %p91 = scmp.ne.s32.totalorder %s83, %s86
    %p92 = scmp.eq.s32.totalorder %s9, 0
    %p93 = por %p91, %p92
    %p94 = scmp.ne.s32.totalorder %s83, %s86
    %p95 = scmp.eq.s32.totalorder %s14, 1
    %p96 = por %p94, %p95
    %p97 = scmp.ne.s32.totalorder %s86, %s87
    %p98 = scmp.eq.s32.totalorder %s14, 0
    %p99 = por %p97, %p98
    %p100 = scmp.ne.s32.totalorder %s86, %s87
    %p101 = scmp.eq.s32.totalorder %s15, 1
    %p102 = por %p100, %p101
    %p104 = scmp.ne.s32.totalorder %s87, %s103
    %p105 = scmp.eq.s32.totalorder %s15, 0
    %p106 = por %p104, %p105
    %s107 = ssub.s32 %s17, %s24
    %s108 = ssub.s32 %s16, %s28
    %s109 = sor.u32 %s107, %s108
    %p110 = scmp.eq.s32.totalorder %s109, 0
    %s112 = sadd.s32 %s111, 1
    %s113 = scalar_select %p110, %s111, %s112
    %p116 = pneg %p110
    %p117 = scmp.eq.s32.totalorder %s9, 1
    %p118 = por %p116, %p117
    %p119 = scmp.ne.s32.totalorder %s111, %s114
    %p120 = scmp.eq.s32.totalorder %s9, 0
    %p121 = por %p119, %p120
    %p122 = scmp.ne.s32.totalorder %s111, %s114
    %p123 = scmp.eq.s32.totalorder %s14, 1
    %p124 = por %p122, %p123
    %p125 = scmp.ne.s32.totalorder %s114, %s115
    %p126 = scmp.eq.s32.totalorder %s14, 0
    %p127 = por %p125, %p126
    %p128 = scmp.ne.s32.totalorder %s114, %s115
    %p129 = scmp.eq.s32.totalorder %s15, 1
    %p130 = por %p128, %p129
    %p132 = scmp.ne.s32.totalorder %s115, %s131
    %p133 = scmp.eq.s32.totalorder %s15, 0
    %p134 = por %p132, %p133
    %p135 = scmp.le.s32.totalorder 1, %s9
    %p136 = scmp.lt.s32.totalorder %s9, 3
    %p137 = pnand %p135, %p136
    %p138 = pneg %p137
    // Predicated region
    $region9: #{repvgg_pallas.1} parent=5 // pred_check
      _
    $region10: #{repvgg_pallas.1} parent=5 // pred_check_branch
      %140 = sbr.rel (%p137) target = $region12
    $region11: #{repvgg_pallas.1} parent=5 // pred_region
      %s141 = ssub.s32 %s9, 1
      // Predicated region
      $region13: #{repvgg_pallas.1} parent=11 // pred_check
        %p142 = pneg %p73
      $region14: #{repvgg_pallas.1} parent=11 // pred_check_branch
        %144 = sbr.rel (%p142) target = $region16
      $region15: #{repvgg_pallas.1} parent=11 // pred_region
        %p145 = scmp.lt.s32.totalorder %s18, 0
        %s146 = scalar_select %p145, %s18, 0
        %s147 = smul.addr %s146, 4
        %s148 = scalar_lea.vmem %s1, %s147
      $region16: #{repvgg_pallas.1} parent=11 // pred_fallthru
        _
      // Predicated region
      $region17: #{repvgg_pallas.1} parent=11 // pred_check
        %p149 = pneg %p99
      $region18: #{repvgg_pallas.1} parent=11 // pred_check_branch
        %151 = sbr.rel (%p149) target = $region20
      $region19: #{repvgg_pallas.1} parent=11 // pred_region
        %p152 = scmp.lt.s32.totalorder %s18, 0
        %s153 = scalar_select %p152, %s18, 0
        %s154 = scalar_lea.vmem %s2, %s153
      $region20: #{repvgg_pallas.1} parent=11 // pred_fallthru
        _
    $region12: #{repvgg_pallas.1} parent=5 // pred_fallthru
      _
    %p155 = scmp.lt.s32.totalorder %s9, 2
    // Predicated region
    $region21: #{repvgg_pallas.1} parent=5 // pred_check
      %p156 = pneg %p155
    $region22: #{repvgg_pallas.1} parent=5 // pred_check_branch
      %158 = sbr.rel (%p156) target = $region24
    $region23: #{repvgg_pallas.1} parent=5 // pred_region
      // Predicated region
      $region25: #{repvgg_pallas.1} parent=23 // pred_check
        %p159 = pneg %p41
      $region26: #{repvgg_pallas.1} parent=23 // pred_check_branch
        %161 = sbr.rel (%p159) target = $region28
      $region27: #{repvgg_pallas.1} parent=23 // pred_region
        %p162 = scmp.lt.s32.totalorder %s17, 1
        %s163 = scalar_select %p162, %s17, 1
        %s164 = smul.addr %s163, 54
        %s165 = smul.addr %s164, 4
        %s166 = scalar_lea.vmem %s0, %s165
      $region28: #{repvgg_pallas.1} parent=23 // pred_fallthru
        _
    $region24: #{repvgg_pallas.1} parent=5 // pred_fallthru
      _
    %p167 = scmp.le.s32.totalorder 1, %s9
    %p168 = scmp.lt.s32.totalorder %s9, 3
    %p169 = pnand %p167, %p168
    %p170 = pneg %p169
    // Predicated region
    $region29: #{repvgg_pallas.1} parent=5 // pred_check
      _
    $region30: #{repvgg_pallas.1} parent=5 // pred_check_branch
      %172 = sbr.rel (%p169) target = $region32
    $region31: #{repvgg_pallas.1} parent=5 // pred_region
      %s173 = ssub.s32 %s9, 1
      %p174 = scmp.lt.s32.totalorder %s19, 1
      %s175 = scalar_select %p174, %s19, 1
      %s176 = smul.addr %s175, 54
      %s177 = smul.addr %s176, 4
      %s178 = scalar_lea.vmem %s0, %s177
      %p179 = pneg %p47
      %p180 = pneg %p44
      %p181 = scmp.lt.s32.totalorder %s18, 0
      %s182 = scalar_select %p181, %s18, 0
      %s183 = smul.addr %s182, 4
      %s184 = scalar_lea.vmem %s1, %s183
      %p185 = pneg %p73
      %p186 = pneg %p70
      %p187 = scmp.lt.s32.totalorder %s18, 0
      %s188 = scalar_select %p187, %s18, 0
      %s189 = scalar_lea.vmem %s2, %s188
      %p190 = pneg %p99
      %p191 = pneg %p96
      %p192 = pneg %p127
      %p193 = pneg %p124
      %p194 = scmp.lt.s32.totalorder %s19, 1
      %s195 = scalar_select %p194, %s19, 1
      %p196 = scmp.lt.s32.totalorder %s18, 0
      %s197 = scalar_select %p196, %s18, 0
      %s198 = smul.addr %s195, 32
      %s199 = sadd.s32 %s197, %s198
      %s200 = smul.addr %s199, 8
      %s201 = scalar_lea.vmem %s3, %s200
      %p202 = scmp.lt.s32.totalorder %s19, 1
      %s203 = scalar_select %p202, %s19, 1
      %s204 = smul.addr %s203, 54
      %s205 = smul.addr %s204, 4
      %s206 = scalar_lea.vmem %s0, %s205
      %p207 = scmp.lt.s32.totalorder %s18, 0
      %s208 = scalar_select %p207, %s18, 0
      %s209 = smul.addr %s208, 4
      %s210 = scalar_lea.vmem %s1, %s209
      %p211 = scmp.lt.s32.totalorder %s18, 0
      %s212 = scalar_select %p211, %s18, 0
      %s213 = scalar_lea.vmem %s2, %s212
      %p214 = scmp.lt.s32.totalorder %s19, 1
      %s215 = scalar_select %p214, %s19, 1
      %p216 = scmp.lt.s32.totalorder %s18, 0
      %s217 = scalar_select %p216, %s18, 0
      %s218 = smul.addr %s215, 32
      %s219 = sadd.s32 %s217, %s218
      %s220 = smul.addr %s219, 8
      %s221 = scalar_lea.vmem %s3, %s220
      %v223 = vld [vmem:[%s213] sm:$0x1]
      %v224 = vld [vmem:[%s206] sm:$0xf]
      %v225 = vld [vmem:[%s206 + $0x4] sm:$0xf]
      %v226 = vld [vmem:[%s206 + $0x8] sm:$0x1]
      %v227 = vld [vmem:[%s206 + $0xc] sm:$0xf]
      %v228 = vld [vmem:[%s206 + $0x10] sm:$0xf]
      %v229 = vld [vmem:[%s206 + $0x14] sm:$0x1]
      %v230 = vld [vmem:[%s206 + $0x18] sm:$0xf]
      %v231 = vld [vmem:[%s206 + $0x1c] sm:$0xf]
      %v232 = vld [vmem:[%s206 + $0x20] sm:$0x1]
      %v233 = vld [vmem:[%s206 + $0x24] sm:$0xf]
      %v234 = vld [vmem:[%s206 + $0x28] sm:$0xf]
      %v235 = vld [vmem:[%s206 + $0x2c] sm:$0x1]
      %v236 = vld [vmem:[%s206 + $0x30] sm:$0xf]
      %v237 = vld [vmem:[%s206 + $0x34] sm:$0xf]
      %v238 = vld [vmem:[%s206 + $0x38] sm:$0x1]
      %v239 = vld [vmem:[%s206 + $0x3c] sm:$0xf]
      %v240 = vld [vmem:[%s206 + $0x40] sm:$0xf]
      %v241 = vld [vmem:[%s206 + $0x44] sm:$0x1]
      %v242 = vld [vmem:[%s206 + $0x48] sm:$0xf]
      %v243 = vld [vmem:[%s206 + $0x4c] sm:$0xf]
      %v244 = vld [vmem:[%s206 + $0x50] sm:$0x1]
      %v245 = vld [vmem:[%s206 + $0x54] sm:$0xf]
      %v246 = vld [vmem:[%s206 + $0x58] sm:$0xf]
      %v247 = vld [vmem:[%s206 + $0x5c] sm:$0x1]
      %v248 = vld [vmem:[%s206 + $0x60] sm:$0xf]
      %v249 = vld [vmem:[%s206 + $0x64] sm:$0xf]
      %v250 = vld [vmem:[%s206 + $0x68] sm:$0x1]
      %v251 = vld [vmem:[%s206 + $0x6c] sm:$0xf]
      %v252 = vld [vmem:[%s206 + $0x70] sm:$0xf]
      %v253 = vld [vmem:[%s206 + $0x74] sm:$0x1]
      %v254 = vld [vmem:[%s206 + $0x78] sm:$0xf]
      %v255 = vld [vmem:[%s206 + $0x7c] sm:$0xf]
      %v256 = vld [vmem:[%s206 + $0x80] sm:$0x1]
      %v257 = vld [vmem:[%s206 + $0x84] sm:$0xf]
      %v258 = vld [vmem:[%s206 + $0x88] sm:$0xf]
      %v259 = vld [vmem:[%s206 + $0x8c] sm:$0x1]
      %v260 = vld [vmem:[%s206 + $0x90] sm:$0xf]
      %v261 = vld [vmem:[%s206 + $0x94] sm:$0xf]
      %v262 = vld [vmem:[%s206 + $0x98] sm:$0x1]
      %v263 = vld [vmem:[%s206 + $0x9c] sm:$0xf]
      %v264 = vld [vmem:[%s206 + $0xa0] sm:$0xf]
      %v265 = vld [vmem:[%s206 + $0xa4] sm:$0x1]
      %v266 = vld [vmem:[%s206 + $0xa8] sm:$0xf]
      %v267 = vld [vmem:[%s206 + $0xac] sm:$0xf]
      %v268 = vld [vmem:[%s206 + $0xb0] sm:$0x1]
      %v269 = vld [vmem:[%s206 + $0xb4] sm:$0xf]
      %v270 = vld [vmem:[%s206 + $0xb8] sm:$0xf]
      %v271 = vld [vmem:[%s206 + $0xbc] sm:$0x1]
      %v272 = vld [vmem:[%s206 + $0xc0] sm:$0xf]
      %v273 = vld [vmem:[%s206 + $0xc4] sm:$0xf]
      %v274 = vld [vmem:[%s206 + $0xc8] sm:$0x1]
      %v275 = vld [vmem:[%s206 + $0xcc] sm:$0xf]
      %v276 = vld [vmem:[%s206 + $0xd0] sm:$0xf]
      %v277 = vld [vmem:[%s206 + $0xd4] sm:$0x1]
      %v314 = vunpack.c.l.b16 %v224
      %v315 = vunpack.c.l.b16 %v225
      %v316 = vunpack.c.l.b16 %v227
      %v317 = vunpack.c.l.b16 %v228
      %v318 = vunpack.c.l.b16 %v230
      %v319 = vunpack.c.l.b16 %v231
      %v320 = vunpack.c.l.b16 %v233
      %v321 = vunpack.c.l.b16 %v234
      %v322 = vunpack.c.l.b16 %v236
      %v323 = vunpack.c.l.b16 %v237
      %v324 = vunpack.c.l.b16 %v239
      %v325 = vunpack.c.l.b16 %v240
      %v326 = vunpack.c.l.b16 %v242
      %v327 = vunpack.c.l.b16 %v243
      %v328 = vunpack.c.l.b16 %v245
      %v329 = vunpack.c.l.b16 %v246
      %v330 = vunpack.c.l.b16 %v248
      %v331 = vunpack.c.l.b16 %v249
      %v332 = vunpack.c.l.b16 %v251
      %v333 = vunpack.c.l.b16 %v252
      %v334 = vunpack.c.l.b16 %v254
      %v335 = vunpack.c.l.b16 %v255
      %v336 = vunpack.c.l.b16 %v257
      %v337 = vunpack.c.l.b16 %v258
      %v338 = vunpack.c.l.b16 %v260
      %v339 = vunpack.c.l.b16 %v261
      %v340 = vunpack.c.l.b16 %v263
      %v341 = vunpack.c.l.b16 %v264
      %v342 = vunpack.c.l.b16 %v266
      %v343 = vunpack.c.l.b16 %v267
      %v344 = vunpack.c.l.b16 %v269
      %v345 = vunpack.c.l.b16 %v270
      %v346 = vunpack.c.l.b16 %v272
      %v347 = vunpack.c.l.b16 %v273
      %v348 = vunpack.c.l.b16 %v275
      %v349 = vunpack.c.l.b16 %v276
      %v350 = vpack.c.b16 %v315, %v314
      %v351 = vpack.c.b16 %v317, %v316
      %v352 = vpack.c.b16 %v319, %v318
      %v353 = vpack.c.b16 %v321, %v320
      %v354 = vpack.c.b16 %v323, %v322
      %v355 = vpack.c.b16 %v325, %v324
      %v356 = vpack.c.b16 %v327, %v326
      %v357 = vpack.c.b16 %v329, %v328
      %v358 = vpack.c.b16 %v331, %v330
      %v359 = vpack.c.b16 %v333, %v332
      %v360 = vpack.c.b16 %v335, %v334
      %v361 = vpack.c.b16 %v337, %v336
      %v362 = vpack.c.b16 %v339, %v338
      %v363 = vpack.c.b16 %v341, %v340
      %v364 = vpack.c.b16 %v343, %v342
      %v365 = vpack.c.b16 %v345, %v344
      %v366 = vpack.c.b16 %v347, %v346
      %v367 = vpack.c.b16 %v349, %v348
      %v404 = vunpack.c.l.b16 %v226
      %v405 = vunpack.c.l.b16 %v229
      %v406 = vunpack.c.l.b16 %v232
      %v407 = vunpack.c.l.b16 %v235
      %v408 = vunpack.c.l.b16 %v238
      %v409 = vunpack.c.l.b16 %v241
      %v410 = vunpack.c.l.b16 %v244
      %v411 = vunpack.c.l.b16 %v247
      %v412 = vunpack.c.l.b16 %v250
      %v413 = vunpack.c.l.b16 %v253
      %v414 = vunpack.c.l.b16 %v256
      %v415 = vunpack.c.l.b16 %v259
      %v416 = vunpack.c.l.b16 %v262
      %v417 = vunpack.c.l.b16 %v265
      %v418 = vunpack.c.l.b16 %v268
      %v419 = vunpack.c.l.b16 %v271
      %v420 = vunpack.c.l.b16 %v274
      %v421 = vunpack.c.l.b16 %v277
      %v422 = vpack.c.b16 %v404, %v404
      %v423 = vpack.c.b16 %v405, %v405
      %v424 = vpack.c.b16 %v406, %v406
      %v425 = vpack.c.b16 %v407, %v407
      %v426 = vpack.c.b16 %v408, %v408
      %v427 = vpack.c.b16 %v409, %v409
      %v428 = vpack.c.b16 %v410, %v410
      %v429 = vpack.c.b16 %v411, %v411
      %v430 = vpack.c.b16 %v412, %v412
      %v431 = vpack.c.b16 %v413, %v413
      %v432 = vpack.c.b16 %v414, %v414
      %v433 = vpack.c.b16 %v415, %v415
      %v434 = vpack.c.b16 %v416, %v416
      %v435 = vpack.c.b16 %v417, %v417
      %v436 = vpack.c.b16 %v418, %v418
      %v437 = vpack.c.b16 %v419, %v419
      %v438 = vpack.c.b16 %v420, %v420
      %v439 = vpack.c.b16 %v421, %v421
      %vm440 = vsmask.f32 7424
      %v442 = vshrl.u32 %v350, 16
      %v444 = vshll.u32 %v350, 16
      %v446 = vrot.slane %v444, 1
      %v447 = vor.u32 %v442, %v446
      %v449 = vshll.u32 %v422, 16
      %v451 = vrot.slane %v449, 1
      %v452 = vsel %vm440, %v447, %v451
      %v454 = vshrl.u32 %v351, 16
      %v456 = vshll.u32 %v351, 16
      %v458 = vrot.slane %v456, 1
      %v459 = vor.u32 %v454, %v458
      %v461 = vshll.u32 %v423, 16
      %v463 = vrot.slane %v461, 1
      %v464 = vsel %vm440, %v459, %v463
      %v466 = vshrl.u32 %v352, 16
      %v468 = vshll.u32 %v352, 16
      %v470 = vrot.slane %v468, 1
      %v471 = vor.u32 %v466, %v470
      %v473 = vshll.u32 %v424, 16
      %v475 = vrot.slane %v473, 1
      %v476 = vsel %vm440, %v471, %v475
      %v478 = vshrl.u32 %v353, 16
      %v480 = vshll.u32 %v353, 16
      %v482 = vrot.slane %v480, 1
      %v483 = vor.u32 %v478, %v482
      %v485 = vshll.u32 %v425, 16
      %v487 = vrot.slane %v485, 1
      %v488 = vsel %vm440, %v483, %v487
      %v490 = vshrl.u32 %v354, 16
      %v492 = vshll.u32 %v354, 16
      %v494 = vrot.slane %v492, 1
      %v495 = vor.u32 %v490, %v494
      %v497 = vshll.u32 %v426, 16
      %v499 = vrot.slane %v497, 1
      %v500 = vsel %vm440, %v495, %v499
      %v502 = vshrl.u32 %v355, 16
      %v504 = vshll.u32 %v355, 16
      %v506 = vrot.slane %v504, 1
      %v507 = vor.u32 %v502, %v506
      %v509 = vshll.u32 %v427, 16
      %v511 = vrot.slane %v509, 1
      %v512 = vsel %vm440, %v507, %v511
      %v514 = vshrl.u32 %v356, 16
      %v516 = vshll.u32 %v356, 16
      %v518 = vrot.slane %v516, 1
      %v519 = vor.u32 %v514, %v518
      %v521 = vshll.u32 %v428, 16
      %v523 = vrot.slane %v521, 1
      %v524 = vsel %vm440, %v519, %v523
      %v526 = vshrl.u32 %v357, 16
      %v528 = vshll.u32 %v357, 16
      %v530 = vrot.slane %v528, 1
      %v531 = vor.u32 %v526, %v530
      %v533 = vshll.u32 %v429, 16
      %v535 = vrot.slane %v533, 1
      %v536 = vsel %vm440, %v531, %v535
      %v538 = vshrl.u32 %v358, 16
      %v540 = vshll.u32 %v358, 16
      %v542 = vrot.slane %v540, 1
      %v543 = vor.u32 %v538, %v542
      %v545 = vshll.u32 %v430, 16
      %v547 = vrot.slane %v545, 1
      %v548 = vsel %vm440, %v543, %v547
      %v550 = vshrl.u32 %v359, 16
      %v552 = vshll.u32 %v359, 16
      %v554 = vrot.slane %v552, 1
      %v555 = vor.u32 %v550, %v554
      %v557 = vshll.u32 %v431, 16
      %v559 = vrot.slane %v557, 1
      %v560 = vsel %vm440, %v555, %v559
      %v562 = vshrl.u32 %v360, 16
      %v564 = vshll.u32 %v360, 16
      %v566 = vrot.slane %v564, 1
      %v567 = vor.u32 %v562, %v566
      %v569 = vshll.u32 %v432, 16
      %v571 = vrot.slane %v569, 1
      %v572 = vsel %vm440, %v567, %v571
      %v574 = vshrl.u32 %v361, 16
      %v576 = vshll.u32 %v361, 16
      %v578 = vrot.slane %v576, 1
      %v579 = vor.u32 %v574, %v578
      %v581 = vshll.u32 %v433, 16
      %v583 = vrot.slane %v581, 1
      %v584 = vsel %vm440, %v579, %v583
      %v586 = vshrl.u32 %v362, 16
      %v588 = vshll.u32 %v362, 16
      %v590 = vrot.slane %v588, 1
      %v591 = vor.u32 %v586, %v590
      %v593 = vshll.u32 %v434, 16
      %v595 = vrot.slane %v593, 1
      %v596 = vsel %vm440, %v591, %v595
      %v598 = vshrl.u32 %v363, 16
      %v600 = vshll.u32 %v363, 16
      %v602 = vrot.slane %v600, 1
      %v603 = vor.u32 %v598, %v602
      %v605 = vshll.u32 %v435, 16
      %v607 = vrot.slane %v605, 1
      %v608 = vsel %vm440, %v603, %v607
      %v610 = vshrl.u32 %v364, 16
      %v612 = vshll.u32 %v364, 16
      %v614 = vrot.slane %v612, 1
      %v615 = vor.u32 %v610, %v614
      %v617 = vshll.u32 %v436, 16
      %v619 = vrot.slane %v617, 1
      %v620 = vsel %vm440, %v615, %v619
      %v622 = vshrl.u32 %v365, 16
      %v624 = vshll.u32 %v365, 16
      %v626 = vrot.slane %v624, 1
      %v627 = vor.u32 %v622, %v626
      %v629 = vshll.u32 %v437, 16
      %v631 = vrot.slane %v629, 1
      %v632 = vsel %vm440, %v627, %v631
      %v634 = vshrl.u32 %v366, 16
      %v636 = vshll.u32 %v366, 16
      %v638 = vrot.slane %v636, 1
      %v639 = vor.u32 %v634, %v638
      %v641 = vshll.u32 %v438, 16
      %v643 = vrot.slane %v641, 1
      %v644 = vsel %vm440, %v639, %v643
      %v646 = vshrl.u32 %v367, 16
      %v648 = vshll.u32 %v367, 16
      %v650 = vrot.slane %v648, 1
      %v651 = vor.u32 %v646, %v650
      %v653 = vshll.u32 %v439, 16
      %v655 = vrot.slane %v653, 1
      %v656 = vsel %vm440, %v651, %v655
      %vm675 = vcmask 1046528
      %v676 = vrot.slane %v350, 1
      %v677 = vrot.slane %v422, 1
      %v678 = vsel %vm675, %v676, %v677
      %v679 = vrot.slane %v351, 1
      %v680 = vrot.slane %v423, 1
      %v681 = vsel %vm675, %v679, %v680
      %v682 = vrot.slane %v352, 1
      %v683 = vrot.slane %v424, 1
      %v684 = vsel %vm675, %v682, %v683
      %v685 = vrot.slane %v353, 1
      %v686 = vrot.slane %v425, 1
      %v687 = vsel %vm675, %v685, %v686
      %v688 = vrot.slane %v354, 1
      %v689 = vrot.slane %v426, 1
      %v690 = vsel %vm675, %v688, %v689
      %v691 = vrot.slane %v355, 1
      %v692 = vrot.slane %v427, 1
      %v693 = vsel %vm675, %v691, %v692
      %v694 = vrot.slane %v356, 1
      %v695 = vrot.slane %v428, 1
      %v696 = vsel %vm675, %v694, %v695
      %v697 = vrot.slane %v357, 1
      %v698 = vrot.slane %v429, 1
      %v699 = vsel %vm675, %v697, %v698
      %v700 = vrot.slane %v358, 1
      %v701 = vrot.slane %v430, 1
      %v702 = vsel %vm675, %v700, %v701
      %v703 = vrot.slane %v359, 1
      %v704 = vrot.slane %v431, 1
      %v705 = vsel %vm675, %v703, %v704
      %v706 = vrot.slane %v360, 1
      %v707 = vrot.slane %v432, 1
      %v708 = vsel %vm675, %v706, %v707
      %v709 = vrot.slane %v361, 1
      %v710 = vrot.slane %v433, 1
      %v711 = vsel %vm675, %v709, %v710
      %v712 = vrot.slane %v362, 1
      %v713 = vrot.slane %v434, 1
      %v714 = vsel %vm675, %v712, %v713
      %v715 = vrot.slane %v363, 1
      %v716 = vrot.slane %v435, 1
      %v717 = vsel %vm675, %v715, %v716
      %v718 = vrot.slane %v364, 1
      %v719 = vrot.slane %v436, 1
      %v720 = vsel %vm675, %v718, %v719
      %v721 = vrot.slane %v365, 1
      %v722 = vrot.slane %v437, 1
      %v723 = vsel %vm675, %v721, %v722
      %v724 = vrot.slane %v366, 1
      %v725 = vrot.slane %v438, 1
      %v726 = vsel %vm675, %v724, %v725
      %v727 = vrot.slane %v367, 1
      %v728 = vrot.slane %v439, 1
      %v729 = vsel %vm675, %v727, %v728
      %v748 = vld [vmem:[%s210] sm:$0xf]
      %v749 = vld [vmem:[%s210 + $0x4] sm:$0xf]
      %v750 = vld [vmem:[%s210 + $0x8] sm:$0xf]
      %v751 = vld [vmem:[%s210 + $0xc] sm:$0xf]
      %v752 = vld [vmem:[%s210 + $0x10] sm:$0xf]
      %v753 = vld [vmem:[%s210 + $0x14] sm:$0xf]
      %v754 = vld [vmem:[%s210 + $0x18] sm:$0xf]
      %v755 = vld [vmem:[%s210 + $0x1c] sm:$0xf]
      %v756 = vld [vmem:[%s210 + $0x20] sm:$0xf]
      %v757 = vld [vmem:[%s210 + $0x24] sm:$0xf]
      %v758 = vld [vmem:[%s210 + $0x28] sm:$0xf]
      %v759 = vld [vmem:[%s210 + $0x2c] sm:$0xf]
      %v760 = vld [vmem:[%s210 + $0x30] sm:$0xf]
      %v761 = vld [vmem:[%s210 + $0x34] sm:$0xf]
      %v762 = vld [vmem:[%s210 + $0x38] sm:$0xf]
      %v763 = vld [vmem:[%s210 + $0x3c] sm:$0xf]
      %v764 = vld [vmem:[%s210 + $0x40] sm:$0xf]
      %v765 = vld [vmem:[%s210 + $0x44] sm:$0xf]
      %v766 = vld [vmem:[%s210 + $0x48] sm:$0xf]
      %v767 = vld [vmem:[%s210 + $0x4c] sm:$0xf]
      %v768 = vld [vmem:[%s210 + $0x50] sm:$0xf]
      %v769 = vld [vmem:[%s210 + $0x54] sm:$0xf]
      %v770 = vld [vmem:[%s210 + $0x58] sm:$0xf]
      %v771 = vld [vmem:[%s210 + $0x5c] sm:$0xf]
      %v772 = vld [vmem:[%s210 + $0x60] sm:$0xf]
      %v773 = vld [vmem:[%s210 + $0x64] sm:$0xf]
      %v774 = vld [vmem:[%s210 + $0x68] sm:$0xf]
      %v775 = vld [vmem:[%s210 + $0x6c] sm:$0xf]
      %v776 = vld [vmem:[%s210 + $0x70] sm:$0xf]
      %v777 = vld [vmem:[%s210 + $0x74] sm:$0xf]
      %v778 = vld [vmem:[%s210 + $0x78] sm:$0xf]
      %v779 = vld [vmem:[%s210 + $0x7c] sm:$0xf]
      %v780 = vld [vmem:[%s210 + $0x80] sm:$0xf]
      %v781 = vld [vmem:[%s210 + $0x84] sm:$0xf]
      %v782 = vld [vmem:[%s210 + $0x88] sm:$0xf]
      %v783 = vld [vmem:[%s210 + $0x8c] sm:$0xf]
      %v784 = vld [vmem:[%s210 + $0x90] sm:$0xf]
      %v785 = vld [vmem:[%s210 + $0x94] sm:$0xf]
      %v786 = vld [vmem:[%s210 + $0x98] sm:$0xf]
      %v787 = vld [vmem:[%s210 + $0x9c] sm:$0xf]
      %v788 = vld [vmem:[%s210 + $0xa0] sm:$0xf]
      %v789 = vld [vmem:[%s210 + $0xa4] sm:$0xf]
      %v790 = vld [vmem:[%s210 + $0xa8] sm:$0xf]
      %v791 = vld [vmem:[%s210 + $0xac] sm:$0xf]
      %v792 = vld [vmem:[%s210 + $0xb0] sm:$0xf]
      %v793 = vld [vmem:[%s210 + $0xb4] sm:$0xf]
      %v794 = vld [vmem:[%s210 + $0xb8] sm:$0xf]
      %v795 = vld [vmem:[%s210 + $0xbc] sm:$0xf]
      %s796 = scalar_lea.vmem %s210, 192
      %v797 = vld [vmem:[%s796] sm:$0xf]
      %v798 = vld [vmem:[%s796 + $0x4] sm:$0xf]
      %v799 = vld [vmem:[%s796 + $0x8] sm:$0xf]
      %v800 = vld [vmem:[%s796 + $0xc] sm:$0xf]
      %v801 = vld [vmem:[%s796 + $0x10] sm:$0xf]
      %v802 = vld [vmem:[%s796 + $0x14] sm:$0xf]
      %v803 = vld [vmem:[%s796 + $0x18] sm:$0xf]
      %v804 = vld [vmem:[%s796 + $0x1c] sm:$0xf]
      %v805 = vld [vmem:[%s796 + $0x20] sm:$0xf]
      %v806 = vld [vmem:[%s796 + $0x24] sm:$0xf]
      %v807 = vld [vmem:[%s796 + $0x28] sm:$0xf]
      %v808 = vld [vmem:[%s796 + $0x2c] sm:$0xf]
      %v809 = vld [vmem:[%s796 + $0x30] sm:$0xf]
      %v810 = vld [vmem:[%s796 + $0x34] sm:$0xf]
      %v811 = vld [vmem:[%s796 + $0x38] sm:$0xf]
      %v812 = vld [vmem:[%s796 + $0x3c] sm:$0xf]
      %v813 = vld [vmem:[%s796 + $0x40] sm:$0xf]
      %v814 = vld [vmem:[%s796 + $0x44] sm:$0xf]
      %v815 = vld [vmem:[%s796 + $0x48] sm:$0xf]
      %v816 = vld [vmem:[%s796 + $0x4c] sm:$0xf]
      %v817 = vld [vmem:[%s796 + $0x50] sm:$0xf]
      %v818 = vld [vmem:[%s796 + $0x54] sm:$0xf]
      %v819 = vld [vmem:[%s796 + $0x58] sm:$0xf]
      %v820 = vld [vmem:[%s796 + $0x5c] sm:$0xf]
      %v821 = vld [vmem:[%s796 + $0x60] sm:$0xf]
      %v822 = vld [vmem:[%s796 + $0x64] sm:$0xf]
      %v823 = vld [vmem:[%s796 + $0x68] sm:$0xf]
      %v824 = vld [vmem:[%s796 + $0x6c] sm:$0xf]
      %v825 = vld [vmem:[%s796 + $0x70] sm:$0xf]
      %v826 = vld [vmem:[%s796 + $0x74] sm:$0xf]
      %v827 = vld [vmem:[%s796 + $0x78] sm:$0xf]
      %v828 = vld [vmem:[%s796 + $0x7c] sm:$0xf]
      %v829 = vld [vmem:[%s796 + $0x80] sm:$0xf]
      %v830 = vld [vmem:[%s796 + $0x84] sm:$0xf]
      %v831 = vld [vmem:[%s796 + $0x88] sm:$0xf]
      %v832 = vld [vmem:[%s796 + $0x8c] sm:$0xf]
      %v833 = vld [vmem:[%s796 + $0x90] sm:$0xf]
      %v834 = vld [vmem:[%s796 + $0x94] sm:$0xf]
      %v835 = vld [vmem:[%s796 + $0x98] sm:$0xf]
      %v836 = vld [vmem:[%s796 + $0x9c] sm:$0xf]
      %v837 = vld [vmem:[%s796 + $0xa0] sm:$0xf]
      %v838 = vld [vmem:[%s796 + $0xa4] sm:$0xf]
      %v839 = vld [vmem:[%s796 + $0xa8] sm:$0xf]
      %v840 = vld [vmem:[%s796 + $0xac] sm:$0xf]
      %v841 = vld [vmem:[%s796 + $0xb0] sm:$0xf]
      %v842 = vld [vmem:[%s796 + $0xb4] sm:$0xf]
      %v843 = vld [vmem:[%s796 + $0xb8] sm:$0xf]
      %v844 = vld [vmem:[%s796 + $0xbc] sm:$0xf]
      %v893 = vunpack.c.l.b16 %v797
      %v894 = vunpack.c.l.b16 %v798
      %v895 = vunpack.c.l.b16 %v799
      %v896 = vunpack.c.l.b16 %v800
      %v897 = vunpack.c.l.b16 %v801
      %v898 = vunpack.c.l.b16 %v802
      %v899 = vunpack.c.l.b16 %v803
      %v900 = vunpack.c.l.b16 %v804
      %v901 = vunpack.c.l.b16 %v805
      %v902 = vunpack.c.l.b16 %v806
      %v903 = vunpack.c.l.b16 %v807
      %v904 = vunpack.c.l.b16 %v808
      %v905 = vunpack.c.l.b16 %v809
      %v906 = vunpack.c.l.b16 %v810
      %v907 = vunpack.c.l.b16 %v811
      %v908 = vunpack.c.l.b16 %v812
      %v909 = vunpack.c.l.b16 %v813
      %v910 = vunpack.c.l.b16 %v814
      %v911 = vunpack.c.l.b16 %v815
      %v912 = vunpack.c.l.b16 %v816
      %v913 = vunpack.c.l.b16 %v817
      %v914 = vunpack.c.l.b16 %v818
      %v915 = vunpack.c.l.b16 %v819
      %v916 = vunpack.c.l.b16 %v820
      %v917 = vunpack.c.l.b16 %v821
      %v918 = vunpack.c.l.b16 %v822
      %v919 = vunpack.c.l.b16 %v823
      %v920 = vunpack.c.l.b16 %v824
      %v921 = vunpack.c.l.b16 %v825
      %v922 = vunpack.c.l.b16 %v826
      %v923 = vunpack.c.l.b16 %v827
      %v924 = vunpack.c.l.b16 %v828
      %v925 = vunpack.c.l.b16 %v829
      %v926 = vunpack.c.l.b16 %v830
      %v927 = vunpack.c.l.b16 %v831
      %v928 = vunpack.c.l.b16 %v832
      %v929 = vunpack.c.l.b16 %v833
      %v930 = vunpack.c.l.b16 %v834
      %v931 = vunpack.c.l.b16 %v835
      %v932 = vunpack.c.l.b16 %v836
      %v933 = vunpack.c.l.b16 %v837
      %v934 = vunpack.c.l.b16 %v838
      %v935 = vunpack.c.l.b16 %v839
      %v936 = vunpack.c.l.b16 %v840
      %v937 = vunpack.c.l.b16 %v841
      %v938 = vunpack.c.l.b16 %v842
      %v939 = vunpack.c.l.b16 %v843
      %v940 = vunpack.c.l.b16 %v844
      %v941 = vpack.c.b16 %v894, %v893
      %v942 = vpack.c.b16 %v896, %v895
      %v943 = vpack.c.b16 %v898, %v897
      %v944 = vpack.c.b16 %v900, %v899
      %v945 = vpack.c.b16 %v902, %v901
      %v946 = vpack.c.b16 %v904, %v903
      %v947 = vpack.c.b16 %v906, %v905
      %v948 = vpack.c.b16 %v908, %v907
      %v949 = vpack.c.b16 %v910, %v909
      %v950 = vpack.c.b16 %v912, %v911
      %v951 = vpack.c.b16 %v914, %v913
      %v952 = vpack.c.b16 %v916, %v915
      %v953 = vpack.c.b16 %v918, %v917
      %v954 = vpack.c.b16 %v920, %v919
      %v955 = vpack.c.b16 %v922, %v921
      %v956 = vpack.c.b16 %v924, %v923
      %v957 = vpack.c.b16 %v926, %v925
      %v958 = vpack.c.b16 %v928, %v927
      %v959 = vpack.c.b16 %v930, %v929
      %v960 = vpack.c.b16 %v932, %v931
      %v961 = vpack.c.b16 %v934, %v933
      %v962 = vpack.c.b16 %v936, %v935
      %v963 = vpack.c.b16 %v938, %v937
      %v964 = vpack.c.b16 %v940, %v939
      %989 = vmatprep.subr.bf16.mxu0 0
      %990 = vmatpush1.bf16.msra.mxu0 %v941
      %991 = vmatprep.subr.bf16.mxu0 0
      %992 = vmatpush1.bf16.msra.mxu0 %v942
      %993 = vmatprep.subr.bf16.mxu0 0
      %994 = vmatpush1.bf16.msra.mxu0 %v943
      %995 = vmatprep.subr.bf16.mxu0 0
      %996 = vmatpush1.bf16.msra.mxu0 %v944
      %997 = vmatprep.subr.bf16.mxu0 0
      %998 = vmatpush1.bf16.msra.mxu0 %v945
      %999 = vmatprep.subr.bf16.mxu0 0
      %1000 = vmatpush1.bf16.msra.mxu0 %v946
      %1001 = vmatprep.subr.bf16.mxu0 0
      %1002 = vmatpush1.bf16.msra.mxu0 %v947
      %1003 = vmatprep.subr.bf16.mxu0 0
      %1004 = vmatpush1.bf16.msra.mxu0 %v948
      %1005 = vmatprep.subr.bf16.mxu0 0
      %1006 = vmatpush1.bf16.msra.mxu0 %v949
      %1007 = vmatprep.subr.bf16.mxu0 0
      %1008 = vmatpush1.bf16.msra.mxu0 %v950
      %1009 = vmatprep.subr.bf16.mxu0 0
      %1010 = vmatpush1.bf16.msra.mxu0 %v951
      %1011 = vmatprep.subr.bf16.mxu0 0
      %1012 = vmatpush1.bf16.msra.mxu0 %v952
      %1013 = vmatprep.subr.bf16.mxu0 0
      %1014 = vmatpush1.bf16.msra.mxu0 %v953
      %1015 = vmatprep.subr.bf16.mxu0 0
      %1016 = vmatpush1.bf16.msra.mxu0 %v954
      %1017 = vmatprep.subr.bf16.mxu0 0
      %1018 = vmatpush1.bf16.msra.mxu0 %v955
      %1019 = vmatprep.subr.bf16.mxu0 0
      %1020 = vmatpush1.bf16.msra.mxu0 %v956
      %1021 = vmatprep.mubr.bf16.mxu0 %v464
      %1022 = vmatmul.mubr.bf16.gmra.mrb[0].mxu0 %v351
      %v1023 = vpop.f32.mrb[0].mxu0
      %v1024 = vadd.f32 0.0, %v1023
      %v1025 = vpop.f32.mrb[0].mxu0
      %v1026 = vpop.f32.mrb[0].mxu0
      %v1027 = vadd.f32 0.0, %v1026
      %v1028 = vpop.f32.mrb[0].mxu0
      %1029 = vmatprep.mubr.bf16.mxu0 %v476
      %1030 = vmatmul.mubr.bf16.gmra.mrb[0].mxu0 %v352
      %v1031 = vpop.f32.mrb[0].mxu0
      %v1032 = vadd.f32 0.0, %v1031
      %v1033 = vpop.f32.mrb[0].mxu0
      %v1034 = vpop.f32.mrb[0].mxu0
      %v1035 = vadd.f32 0.0, %v1034
      %v1036 = vpop.f32.mrb[0].mxu0
      %1037 = vmatprep.mubr.bf16.mxu0 %v488
      %1038 = vmatmul.mubr.bf16.gmra.mrb[0].mxu0 %v353
      %v1039 = vpop.f32.mrb[0].mxu0
      %v1040 = vadd.f32 0.0, %v1039
      %v1041 = vpop.f32.mrb[0].mxu0
      %v1042 = vpop.f32.mrb[0].mxu0
      %v1043 = vadd.f32 0.0, %v1042
      %v1044 = vpop.f32.mrb[0].mxu0
      %1045 = vmatprep.mubr.bf16.mxu0 %v500
      %1046 = vmatmul.mubr.bf16.gmra.mrb[0].mxu0 %v354
      %v1047 = vpop.f32.mrb[0].mxu0
      %v1048 = vadd.f32 0.0, %v1047
      %v1049 = vpop.f32.mrb[0].mxu0
      %v1050 = vpop.f32.mrb[0].mxu0
      %v1051 = vadd.f32 0.0, %v1050
      %v1052 = vpop.f32.mrb[0].mxu0
      %1053 = vmatprep.mubr.bf16.mxu0 %v512
      %1054 = vmatmul.mubr.bf16.gmra.mrb[0].mxu0 %v355
      %v1055 = vpop.f32.mrb[0].mxu0
      %v1056 = vadd.f32 0.0, %v1055
      %v1057 = vpop.f32.mrb[0].mxu0
      %v1058 = vpop.f32.mrb[0].mxu0
      %v1059 = vadd.f32 0.0, %v1058
      %v1060 = vpop.f32.mrb[0].mxu0
      %1061 = vmatprep.mubr.bf16.mxu0 %v524
      %1062 = vmatmul.mubr.bf16.gmra.mrb[0].mxu0 %v356
      %v1063 = vpop.f32.mrb[0].mxu0
      %v1064 = vadd.f32 0.0, %v1063
      %v1065 = vpop.f32.mrb[0].mxu0
      %v1066 = vpop.f32.mrb[0].mxu0
      %v1067 = vadd.f32 0.0, %v1066
      %v1068 = vpop.f32.mrb[0].mxu0
      %1069 = vmatprep.mubr.bf16.mxu0 %v536
      %1070 = vmatmul.mubr.bf16.gmra.mrb[0].mxu0 %v357
      %v1071 = vpop.f32.mrb[0].mxu0
      %v1072 = vadd.f32 0.0, %v1071
      %v1073 = vpop.f32.mrb[0].mxu0
      %v1074 = vpop.f32.mrb[0].mxu0
      %v1075 = vadd.f32 0.0, %v1074
      %v1076 = vpop.f32.mrb[0].mxu0
      %1077 = vmatprep.mubr.bf16.mxu0 %v548
      %1078 = vmatmul.mubr.bf16.gmra.mrb[0].mxu0 %v358
      %v1079 = vpop.f32.mrb[0].mxu0
      %v1080 = vadd.f32 0.0, %v1079
      %v1081 = vpop.f32.mrb[0].mxu0
      %v1082 = vpop.f32.mrb[0].mxu0
      %v1083 = vadd.f32 0.0, %v1082
      %v1084 = vpop.f32.mrb[0].mxu0
      %1085 = vmatprep.mubr.bf16.mxu0 %v560
      %1086 = vmatmul.mubr.bf16.gmra.mrb[0].mxu0 %v359
      %v1087 = vpop.f32.mrb[0].mxu0
      %v1088 = vadd.f32 0.0, %v1087
      %v1089 = vpop.f32.mrb[0].mxu0
      %v1090 = vpop.f32.mrb[0].mxu0
      %v1091 = vadd.f32 0.0, %v1090
      %v1092 = vpop.f32.mrb[0].mxu0
      %1093 = vmatprep.mubr.bf16.mxu0 %v572
      %1094 = vmatmul.mubr.bf16.gmra.mrb[0].mxu0 %v360
      %v1095 = vpop.f32.mrb[0].mxu0
      %v1096 = vadd.f32 0.0, %v1095
      %v1097 = vpop.f32.mrb[0].mxu0
      %v1098 = vpop.f32.mrb[0].mxu0
      %v1099 = vadd.f32 0.0, %v1098
      %v1100 = vpop.f32.mrb[0].mxu0
      %1101 = vmatprep.mubr.bf16.mxu0 %v584
      %1102 = vmatmul.mubr.bf16.gmra.mrb[0].mxu0 %v361
      %v1103 = vpop.f32.mrb[0].mxu0
      %v1104 = vadd.f32 0.0, %v1103
      %v1105 = vpop.f32.mrb[0].mxu0
      %v1106 = vpop.f32.mrb[0].mxu0
      %v1107 = vadd.f32 0.0, %v1106
      %v1108 = vpop.f32.mrb[0].mxu0
      %1109 = vmatprep.mubr.bf16.mxu0 %v596
      %1110 = vmatmul.mubr.bf16.gmra.mrb[0].mxu0 %v362
      %v1111 = vpop.f32.mrb[0].mxu0
      %v1112 = vadd.f32 0.0, %v1111
      %v1113 = vpop.f32.mrb[0].mxu0
      %v1114 = vpop.f32.mrb[0].mxu0
      %v1115 = vadd.f32 0.0, %v1114
      %v1116 = vpop.f32.mrb[0].mxu0
      %1117 = vmatprep.mubr.bf16.mxu0 %v608
      %1118 = vmatmul.mubr.bf16.gmra.mrb[0].mxu0 %v363
      %v1119 = vpop.f32.mrb[0].mxu0
      %v1120 = vadd.f32 0.0, %v1119
      %v1121 = vpop.f32.mrb[0].mxu0
      %v1122 = vpop.f32.mrb[0].mxu0
      %v1123 = vadd.f32 0.0, %v1122
      %v1124 = vpop.f32.mrb[0].mxu0
      %1125 = vmatprep.mubr.bf16.mxu0 %v620
      %1126 = vmatmul.mubr.bf16.gmra.mrb[0].mxu0 %v364
      %v1127 = vpop.f32.mrb[0].mxu0
      %v1128 = vadd.f32 0.0, %v1127
      %v1129 = vpop.f32.mrb[0].mxu0
      %v1130 = vpop.f32.mrb[0].mxu0
      %v1131 = vadd.f32 0.0, %v1130
      %v1132 = vpop.f32.mrb[0].mxu0
      %1133 = vmatprep.mubr.bf16.mxu0 %v632
      %1134 = vmatmul.mubr.bf16.gmra.mrb[0].mxu0 %v365
      %v1135 = vpop.f32.mrb[0].mxu0
      %v1136 = vadd.f32 0.0, %v1135
      %v1137 = vpop.f32.mrb[0].mxu0
      %v1138 = vpop.f32.mrb[0].mxu0
      %v1139 = vadd.f32 0.0, %v1138
      %v1140 = vpop.f32.mrb[0].mxu0
      %1141 = vmatprep.mubr.bf16.mxu0 %v644
      %1142 = vmatmul.mubr.bf16.gmra.mrb[0].mxu0 %v366
      %v1143 = vpop.f32.mrb[0].mxu0
      %v1144 = vadd.f32 0.0, %v1143
      %v1145 = vpop.f32.mrb[0].mxu0
      %v1146 = vpop.f32.mrb[0].mxu0
      %v1147 = vadd.f32 0.0, %v1146
      %v1148 = vpop.f32.mrb[0].mxu0
      %1149 = vdwg.mxu0
      %1150 = vmatprep.subr.bf16.mxu0 0
      %1151 = vmatpush1.bf16.msra.mxu0 %v957
      %1152 = vmatprep.subr.bf16.mxu0 0
      %1153 = vmatpush1.bf16.msra.mxu0 %v958
      %1154 = vmatprep.subr.bf16.mxu0 0
      %1155 = vmatpush1.bf16.msra.mxu0 %v959
      %1156 = vmatprep.subr.bf16.mxu0 0
      %1157 = vmatpush1.bf16.msra.mxu0 %v960
      %1158 = vmatprep.subr.bf16.mxu0 0
      %1159 = vmatpush1.bf16.msra.mxu0 %v961
      %1160 = vmatprep.subr.bf16.mxu0 0
      %1161 = vmatpush1.bf16.msra.mxu0 %v962
      %1162 = vmatprep.subr.bf16.mxu0 0
      %1163 = vmatpush1.bf16.msra.mxu0 %v963
      %1164 = vmatprep.subr.bf16.mxu0 0
      %1165 = vmatpush1.bf16.msra.mxu0 %v964
      %1166 = vmatprep.subr.bf16.mxu0 0
      %1167 = vmatpush1.bf16.msra.mxu0 0
      %1168 = vmatprep.subr.bf16.mxu0 0
      %1169 = vmatpush1.bf16.msra.mxu0 0
      %1170 = vmatprep.subr.bf16.mxu0 0
      %1171 = vmatpush1.bf16.msra.mxu0 0
      %1172 = vmatprep.subr.bf16.mxu0 0
      %1173 = vmatpush1.bf16.msra.mxu0 0
      %1174 = vmatprep.subr.bf16.mxu0 0
      %1175 = vmatpush1.bf16.msra.mxu0 0
      %1176 = vmatprep.subr.bf16.mxu0 0
      %1177 = vmatpush1.bf16.msra.mxu0 0
      %1178 = vmatprep.subr.bf16.mxu0 0
      %1179 = vmatpush1.bf16.msra.mxu0 0
      %1180 = vmatprep.subr.bf16.mxu0 0
      %1181 = vmatpush1.bf16.msra.mxu0 0
      %1182 = vmatprep.mubr.bf16.mxu0 0
      %1183 = vmatmul.mubr.bf16.gmra.mrb[0].mxu0 %v681
      %v1184 = vpop.f32.mrb[0].mxu0
      %v1185 = vadd.f32 %v1024, %v1184
      %v1186 = vpop.f32.mrb[0].mxu0
      %v1187 = vpop.f32.mrb[0].mxu0
      %v1188 = vadd.f32 %v1027, %v1187
      %v1189 = vpop.f32.mrb[0].mxu0
      %1190 = vmatprep.mubr.bf16.mxu0 0
      %1191 = vmatmul.mubr.bf16.gmra.mrb[0].mxu0 %v684
      %v1192 = vpop.f32.mrb[0].mxu0
      %v1193 = vadd.f32 %v1032, %v1192
      %v1194 = vpop.f32.mrb[0].mxu0
      %v1195 = vpop.f32.mrb[0].mxu0
      %v1196 = vadd.f32 %v1035, %v1195
      %v1197 = vpop.f32.mrb[0].mxu0
      %1198 = vmatprep.mubr.bf16.mxu0 0
      %1199 = vmatmul.mubr.bf16.gmra.mrb[0].mxu0 %v687
      %v1200 = vpop.f32.mrb[0].mxu0
      %v1201 = vadd.f32 %v1040, %v1200
      %v1202 = vpop.f32.mrb[0].mxu0
      %v1203 = vpop.f32.mrb[0].mxu0
      %v1204 = vadd.f32 %v1043, %v1203
      %v1205 = vpop.f32.mrb[0].mxu0
      %1206 = vmatprep.mubr.bf16.mxu0 0
      %1207 = vmatmul.mubr.bf16.gmra.mrb[0].mxu0 %v690
      %v1208 = vpop.f32.mrb[0].mxu0
      %v1209 = vadd.f32 %v1048, %v1208
      %v1210 = vpop.f32.mrb[0].mxu0
      %v1211 = vpop.f32.mrb[0].mxu0
      %v1212 = vadd.f32 %v1051, %v1211
      %v1213 = vpop.f32.mrb[0].mxu0
      %1214 = vmatprep.mubr.bf16.mxu0 0
      %1215 = vmatmul.mubr.bf16.gmra.mrb[0].mxu0 %v693
      %v1216 = vpop.f32.mrb[0].mxu0
      %v1217 = vadd.f32 %v1056, %v1216
      %v1218 = vpop.f32.mrb[0].mxu0
      %v1219 = vpop.f32.mrb[0].mxu0
      %v1220 = vadd.f32 %v1059, %v1219
      %v1221 = vpop.f32.mrb[0].mxu0
      %1222 = vmatprep.mubr.bf16.mxu0 0
      %1223 = vmatmul.mubr.bf16.gmra.mrb[0].mxu0 %v696
      %v1224 = vpop.f32.mrb[0].mxu0
      %v1225 = vadd.f32 %v1064, %v1224
      %v1226 = vpop.f32.mrb[0].mxu0
      %v1227 = vpop.f32.mrb[0].mxu0
      %v1228 = vadd.f32 %v1067, %v1227
      %v1229 = vpop.f32.mrb[0].mxu0
      %1230 = vmatprep.mubr.bf16.mxu0 0
      %1231 = vmatmul.mubr.bf16.gmra.mrb[0].mxu0 %v699
      %v1232 = vpop.f32.mrb[0].mxu0
      %v1233 = vadd.f32 %v1072, %v1232
      %v1234 = vpop.f32.mrb[0].mxu0
      %v1235 = vpop.f32.mrb[0].mxu0
      %v1236 = vadd.f32 %v1075, %v1235
      %v1237 = vpop.f32.mrb[0].mxu0
      %1238 = vmatprep.mubr.bf16.mxu0 0
      %1239 = vmatmul.mubr.bf16.gmra.mrb[0].mxu0 %v702
      %v1240 = vpop.f32.mrb[0].mxu0
      %v1241 = vadd.f32 %v1080, %v1240
      %v1242 = vpop.f32.mrb[0].mxu0
      %v1243 = vpop.f32.mrb[0].mxu0
      %v1244 = vadd.f32 %v1083, %v1243
      %v1245 = vpop.f32.mrb[0].mxu0
      %1246 = vmatprep.mubr.bf16.mxu0 0
      %1247 = vmatmul.mubr.bf16.gmra.mrb[0].mxu0 %v705
      %v1248 = vpop.f32.mrb[0].mxu0
      %v1249 = vadd.f32 %v1088, %v1248
      %v1250 = vpop.f32.mrb[0].mxu0
      %v1251 = vpop.f32.mrb[0].mxu0
      %v1252 = vadd.f32 %v1091, %v1251
      %v1253 = vpop.f32.mrb[0].mxu0
      %1254 = vmatprep.mubr.bf16.mxu0 0
      %1255 = vmatmul.mubr.bf16.gmra.mrb[0].mxu0 %v708
      %v1256 = vpop.f32.mrb[0].mxu0
      %v1257 = vadd.f32 %v1096, %v1256
      %v1258 = vpop.f32.mrb[0].mxu0
      %v1259 = vpop.f32.mrb[0].mxu0
      %v1260 = vadd.f32 %v1099, %v1259
      %v1261 = vpop.f32.mrb[0].mxu0
      %1262 = vmatprep.mubr.bf16.mxu0 0
      %1263 = vmatmul.mubr.bf16.gmra.mrb[0].mxu0 %v711
      %v1264 = vpop.f32.mrb[0].mxu0
      %v1265 = vadd.f32 %v1104, %v1264
      %v1266 = vpop.f32.mrb[0].mxu0
      %v1267 = vpop.f32.mrb[0].mxu0
      %v1268 = vadd.f32 %v1107, %v1267
      %v1269 = vpop.f32.mrb[0].mxu0
      %1270 = vmatprep.mubr.bf16.mxu0 0
      %1271 = vmatmul.mubr.bf16.gmra.mrb[0].mxu0 %v714
      %v1272 = vpop.f32.mrb[0].mxu0
      %v1273 = vadd.f32 %v1112, %v1272
      %v1274 = vpop.f32.mrb[0].mxu0
      %v1275 = vpop.f32.mrb[0].mxu0
      %v1276 = vadd.f32 %v1115, %v1275
      %v1277 = vpop.f32.mrb[0].mxu0
      %1278 = vmatprep.mubr.bf16.mxu0 0
      %1279 = vmatmul.mubr.bf16.gmra.mrb[0].mxu0 %v717
      %v1280 = vpop.f32.mrb[0].mxu0
      %v1281 = vadd.f32 %v1120, %v1280
      %v1282 = vpop.f32.mrb[0].mxu0
      %v1283 = vpop.f32.mrb[0].mxu0
      %v1284 = vadd.f32 %v1123, %v1283
      %v1285 = vpop.f32.mrb[0].mxu0
      %1286 = vmatprep.mubr.bf16.mxu0 0
      %1287 = vmatmul.mubr.bf16.gmra.mrb[0].mxu0 %v720
      %v1288 = vpop.f32.mrb[0].mxu0
      %v1289 = vadd.f32 %v1128, %v1288
      %v1290 = vpop.f32.mrb[0].mxu0
      %v1291 = vpop.f32.mrb[0].mxu0
      %v1292 = vadd.f32 %v1131, %v1291
      %v1293 = vpop.f32.mrb[0].mxu0
      %1294 = vmatprep.mubr.bf16.mxu0 0
      %1295 = vmatmul.mubr.bf16.gmra.mrb[0].mxu0 %v723
      %v1296 = vpop.f32.mrb[0].mxu0
      %v1297 = vadd.f32 %v1136, %v1296
      %v1298 = vpop.f32.mrb[0].mxu0
      %v1299 = vpop.f32.mrb[0].mxu0
      %v1300 = vadd.f32 %v1139, %v1299
      %v1301 = vpop.f32.mrb[0].mxu0
      %1302 = vmatprep.mubr.bf16.mxu0 0
      %1303 = vmatmul.mubr.bf16.gmra.mrb[0].mxu0 %v726
      %v1304 = vpop.f32.mrb[0].mxu0
      %v1305 = vadd.f32 %v1144, %v1304
      %v1306 = vpop.f32.mrb[0].mxu0
      %v1307 = vpop.f32.mrb[0].mxu0
      %v1308 = vadd.f32 %v1147, %v1307
      %v1309 = vpop.f32.mrb[0].mxu0
      %1310 = vdwg.mxu0
      %v1359 = vunpack.c.l.b16 %v748
      %v1360 = vunpack.c.l.b16 %v749
      %v1361 = vunpack.c.l.b16 %v750
      %v1362 = vunpack.c.l.b16 %v751
      %v1363 = vunpack.c.l.b16 %v752
      %v1364 = vunpack.c.l.b16 %v753
      %v1365 = vunpack.c.l.b16 %v754
      %v1366 = vunpack.c.l.b16 %v755
      %v1367 = vunpack.c.l.b16 %v756
      %v1368 = vunpack.c.l.b16 %v757
      %v1369 = vunpack.c.l.b16 %v758
      %v1370 = vunpack.c.l.b16 %v759
      %v1371 = vunpack.c.l.b16 %v760
      %v1372 = vunpack.c.l.b16 %v761
      %v1373 = vunpack.c.l.b16 %v762
      %v1374 = vunpack.c.l.b16 %v763
      %v1375 = vunpack.c.l.b16 %v764
      %v1376 = vunpack.c.l.b16 %v765
      %v1377 = vunpack.c.l.b16 %v766
      %v1378 = vunpack.c.l.b16 %v767
      %v1379 = vunpack.c.l.b16 %v768
      %v1380 = vunpack.c.l.b16 %v769
      %v1381 = vunpack.c.l.b16 %v770
      %v1382 = vunpack.c.l.b16 %v771
      %v1383 = vunpack.c.l.b16 %v772
      %v1384 = vunpack.c.l.b16 %v773
      %v1385 = vunpack.c.l.b16 %v774
      %v1386 = vunpack.c.l.b16 %v775
      %v1387 = vunpack.c.l.b16 %v776
      %v1388 = vunpack.c.l.b16 %v777
      %v1389 = vunpack.c.l.b16 %v778
      %v1390 = vunpack.c.l.b16 %v779
      %v1391 = vunpack.c.l.b16 %v780
      %v1392 = vunpack.c.l.b16 %v781
      %v1393 = vunpack.c.l.b16 %v782
      %v1394 = vunpack.c.l.b16 %v783
      %v1395 = vunpack.c.l.b16 %v784
      %v1396 = vunpack.c.l.b16 %v785
      %v1397 = vunpack.c.l.b16 %v786
      %v1398 = vunpack.c.l.b16 %v787
      %v1399 = vunpack.c.l.b16 %v788
      %v1400 = vunpack.c.l.b16 %v789
      %v1401 = vunpack.c.l.b16 %v790
      %v1402 = vunpack.c.l.b16 %v791
      %v1403 = vunpack.c.l.b16 %v792
      %v1404 = vunpack.c.l.b16 %v793
      %v1405 = vunpack.c.l.b16 %v794
      %v1406 = vunpack.c.l.b16 %v795
      %v1407 = vpack.c.b16 %v1360, %v1359
      %v1408 = vpack.c.b16 %v1362, %v1361
      %v1409 = vpack.c.b16 %v1364, %v1363
      %v1410 = vpack.c.b16 %v1366, %v1365
      %v1411 = vpack.c.b16 %v1368, %v1367
      %v1412 = vpack.c.b16 %v1370, %v1369
      %v1413 = vpack.c.b16 %v1372, %v1371
      %v1414 = vpack.c.b16 %v1374, %v1373
      %v1415 = vpack.c.b16 %v1376, %v1375
      %v1416 = vpack.c.b16 %v1378, %v1377
      %v1417 = vpack.c.b16 %v1380, %v1379
      %v1418 = vpack.c.b16 %v1382, %v1381
      %v1419 = vpack.c.b16 %v1384, %v1383
      %v1420 = vpack.c.b16 %v1386, %v1385
      %v1421 = vpack.c.b16 %v1388, %v1387
      %v1422 = vpack.c.b16 %v1390, %v1389
      %v1423 = vpack.c.b16 %v1392, %v1391
      %v1424 = vpack.c.b16 %v1394, %v1393
      %v1425 = vpack.c.b16 %v1396, %v1395
      %v1426 = vpack.c.b16 %v1398, %v1397
      %v1427 = vpack.c.b16 %v1400, %v1399
      %v1428 = vpack.c.b16 %v1402, %v1401
      %v1429 = vpack.c.b16 %v1404, %v1403
      %v1430 = vpack.c.b16 %v1406, %v1405
      %1455 = vmatprep.subr.bf16.mxu0 0
      %1456 = vmatpush1.bf16.msra.mxu0 %v1407
      %1457 = vmatprep.subr.bf16.mxu0 0
      %1458 = vmatpush1.bf16.msra.mxu0 %v1408
      %1459 = vmatprep.subr.bf16.mxu0 0
      %1460 = vmatpush1.bf16.msra.mxu0 %v1409
      %1461 = vmatprep.subr.bf16.mxu0 0
      %1462 = vmatpush1.bf16.msra.mxu0 %v1410
      %1463 = vmatprep.subr.bf16.mxu0 0
      %1464 = vmatpush1.bf16.msra.mxu0 %v1411
      %1465 = vmatprep.subr.bf16.mxu0 0
      %1466 = vmatpush1.bf16.msra.mxu0 %v1412
      %1467 = vmatprep.subr.bf16.mxu0 0
      %1468 = vmatpush1.bf16.msra.mxu0 %v1413
      %1469 = vmatprep.subr.bf16.mxu0 0
      %1470 = vmatpush1.bf16.msra.mxu0 %v1414
      %1471 = vmatprep.subr.bf16.mxu0 0
      %1472 = vmatpush1.bf16.msra.mxu0 %v1415
      %1473 = vmatprep.subr.bf16.mxu0 0
      %1474 = vmatpush1.bf16.msra.mxu0 %v1416
      %1475 = vmatprep.subr.bf16.mxu0 0
      %1476 = vmatpush1.bf16.msra.mxu0 %v1417
      %1477 = vmatprep.subr.bf16.mxu0 0
      %1478 = vmatpush1.bf16.msra.mxu0 %v1418
      %1479 = vmatprep.subr.bf16.mxu0 0
      %1480 = vmatpush1.bf16.msra.mxu0 %v1419
      %1481 = vmatprep.subr.bf16.mxu0 0
      %1482 = vmatpush1.bf16.msra.mxu0 %v1420
      %1483 = vmatprep.subr.bf16.mxu0 0
      %1484 = vmatpush1.bf16.msra.mxu0 %v1421
      %1485 = vmatprep.subr.bf16.mxu0 0
      %1486 = vmatpush1.bf16.msra.mxu0 %v1422
      %1487 = vmatprep.mubr.bf16.mxu0 %v452
      %1488 = vmatmul.mubr.bf16.gmra.mrb[0].mxu0 %v350
      %v1489 = vpop.f32.mrb[0].mxu0
      %v1490 = vadd.f32 %v1185, %v1489
      %v1491 = vpop.f32.mrb[0].mxu0
      %v1492 = vpop.f32.mrb[0].mxu0
      %v1493 = vadd.f32 %v1188, %v1492
      %v1494 = vpop.f32.mrb[0].mxu0
      %1495 = vmatprep.mubr.bf16.mxu0 %v464
      %1496 = vmatmul.mubr.bf16.gmra.mrb[0].mxu0 %v351
      %v1497 = vpop.f32.mrb[0].mxu0
      %v1498 = vadd.f32 %v1193, %v1497
      %v1499 = vpop.f32.mrb[0].mxu0
      %v1500 = vpop.f32.mrb[0].mxu0
      %v1501 = vadd.f32 %v1196, %v1500
      %v1502 = vpop.f32.mrb[0].mxu0
      %1503 = vmatprep.mubr.bf16.mxu0 %v476
      %1504 = vmatmul.mubr.bf16.gmra.mrb[0].mxu0 %v352
      %v1505 = vpop.f32.mrb[0].mxu0
      %v1506 = vadd.f32 %v1201, %v1505
      %v1507 = vpop.f32.mrb[0].mxu0
      %v1508 = vpop.f32.mrb[0].mxu0
      %v1509 = vadd.f32 %v1204, %v1508
      %v1510 = vpop.f32.mrb[0].mxu0
      %1511 = vmatprep.mubr.bf16.mxu0 %v488
      %1512 = vmatmul.mubr.bf16.gmra.mrb[0].mxu0 %v353
      %v1513 = vpop.f32.mrb[0].mxu0
      %v1514 = vadd.f32 %v1209, %v1513
      %v1515 = vpop.f32.mrb[0].mxu0
      %v1516 = vpop.f32.mrb[0].mxu0
      %v1517 = vadd.f32 %v1212, %v1516
      %v1518 = vpop.f32.mrb[0].mxu0
      %1519 = vmatprep.mubr.bf16.mxu0 %v500
      %1520 = vmatmul.mubr.bf16.gmra.mrb[0].mxu0 %v354
      %v1521 = vpop.f32.mrb[0].mxu0
      %v1522 = vadd.f32 %v1217, %v1521
      %v1523 = vpop.f32.mrb[0].mxu0
      %v1524 = vpop.f32.mrb[0].mxu0
      %v1525 = vadd.f32 %v1220, %v1524
      %v1526 = vpop.f32.mrb[0].mxu0
      %1527 = vmatprep.mubr.bf16.mxu0 %v512
      %1528 = vmatmul.mubr.bf16.gmra.mrb[0].mxu0 %v355
      %v1529 = vpop.f32.mrb[0].mxu0
      %v1530 = vadd.f32 %v1225, %v1529
      %v1531 = vpop.f32.mrb[0].mxu0
      %v1532 = vpop.f32.mrb[0].mxu0
      %v1533 = vadd.f32 %v1228, %v1532
      %v1534 = vpop.f32.mrb[0].mxu0
      %1535 = vmatprep.mubr.bf16.mxu0 %v524
      %1536 = vmatmul.mubr.bf16.gmra.mrb[0].mxu0 %v356
      %v1537 = vpop.f32.mrb[0].mxu0
      %v1538 = vadd.f32 %v1233, %v1537
      %v1539 = vpop.f32.mrb[0].mxu0
      %v1540 = vpop.f32.mrb[0].mxu0
      %v1541 = vadd.f32 %v1236, %v1540
      %v1542 = vpop.f32.mrb[0].mxu0
      %1543 = vmatprep.mubr.bf16.mxu0 %v536
      %1544 = vmatmul.mubr.bf16.gmra.mrb[0].mxu0 %v357
      %v1545 = vpop.f32.mrb[0].mxu0
      %v1546 = vadd.f32 %v1241, %v1545
      %v1547 = vpop.f32.mrb[0].mxu0
      %v1548 = vpop.f32.mrb[0].mxu0
      %v1549 = vadd.f32 %v1244, %v1548
      %v1550 = vpop.f32.mrb[0].mxu0
      %1551 = vmatprep.mubr.bf16.mxu0 %v548
      %1552 = vmatmul.mubr.bf16.gmra.mrb[0].mxu0 %v358
      %v1553 = vpop.f32.mrb[0].mxu0
      %v1554 = vadd.f32 %v1249, %v1553
      %v1555 = vpop.f32.mrb[0].mxu0
      %v1556 = vpop.f32.mrb[0].mxu0
      %v1557 = vadd.f32 %v1252, %v1556
      %v1558 = vpop.f32.mrb[0].mxu0
      %1559 = vmatprep.mubr.bf16.mxu0 %v560
      %1560 = vmatmul.mubr.bf16.gmra.mrb[0].mxu0 %v359
      %v1561 = vpop.f32.mrb[0].mxu0
      %v1562 = vadd.f32 %v1257, %v1561
      %v1563 = vpop.f32.mrb[0].mxu0
      %v1564 = vpop.f32.mrb[0].mxu0
      %v1565 = vadd.f32 %v1260, %v1564
      %v1566 = vpop.f32.mrb[0].mxu0
      %1567 = vmatprep.mubr.bf16.mxu0 %v572
      %1568 = vmatmul.mubr.bf16.gmra.mrb[0].mxu0 %v360
      %v1569 = vpop.f32.mrb[0].mxu0
      %v1570 = vadd.f32 %v1265, %v1569
      %v1571 = vpop.f32.mrb[0].mxu0
      %v1572 = vpop.f32.mrb[0].mxu0
      %v1573 = vadd.f32 %v1268, %v1572
      %v1574 = vpop.f32.mrb[0].mxu0
      %1575 = vmatprep.mubr.bf16.mxu0 %v584
      %1576 = vmatmul.mubr.bf16.gmra.mrb[0].mxu0 %v361
      %v1577 = vpop.f32.mrb[0].mxu0
      %v1578 = vadd.f32 %v1273, %v1577
      %v1579 = vpop.f32.mrb[0].mxu0
      %v1580 = vpop.f32.mrb[0].mxu0
      %v1581 = vadd.f32 %v1276, %v1580
      %v1582 = vpop.f32.mrb[0].mxu0
      %1583 = vmatprep.mubr.bf16.mxu0 %v596
      %1584 = vmatmul.mubr.bf16.gmra.mrb[0].mxu0 %v362
      %v1585 = vpop.f32.mrb[0].mxu0
      %v1586 = vadd.f32 %v1281, %v1585
      %v1587 = vpop.f32.mrb[0].mxu0
      %v1588 = vpop.f32.mrb[0].mxu0
      %v1589 = vadd.f32 %v1284, %v1588
      %v1590 = vpop.f32.mrb[0].mxu0
      %1591 = vmatprep.mubr.bf16.mxu0 %v608
      %1592 = vmatmul.mubr.bf16.gmra.mrb[0].mxu0 %v363
      %v1593 = vpop.f32.mrb[0].mxu0
      %v1594 = vadd.f32 %v1289, %v1593
      %v1595 = vpop.f32.mrb[0].mxu0
      %v1596 = vpop.f32.mrb[0].mxu0
      %v1597 = vadd.f32 %v1292, %v1596
      %v1598 = vpop.f32.mrb[0].mxu0
      %1599 = vmatprep.mubr.bf16.mxu0 %v620
      %1600 = vmatmul.mubr.bf16.gmra.mrb[0].mxu0 %v364
      %v1601 = vpop.f32.mrb[0].mxu0
      %v1602 = vadd.f32 %v1297, %v1601
      %v1603 = vpop.f32.mrb[0].mxu0
      %v1604 = vpop.f32.mrb[0].mxu0
      %v1605 = vadd.f32 %v1300, %v1604
      %v1606 = vpop.f32.mrb[0].mxu0
      %1607 = vmatprep.mubr.bf16.mxu0 %v632
      %1608 = vmatmul.mubr.bf16.gmra.mrb[0].mxu0 %v365
      %v1609 = vpop.f32.mrb[0].mxu0
      %v1610 = vadd.f32 %v1305, %v1609
      %v1611 = vpop.f32.mrb[0].mxu0
      %v1612 = vpop.f32.mrb[0].mxu0
      %v1613 = vadd.f32 %v1308, %v1612
      %v1614 = vpop.f32.mrb[0].mxu0
      %1615 = vdwg.mxu0
      %1616 = vmatprep.subr.bf16.mxu0 0
      %1617 = vmatpush1.bf16.msra.mxu0 %v1423
      %1618 = vmatprep.subr.bf16.mxu0 0
      %1619 = vmatpush1.bf16.msra.mxu0 %v1424
      %1620 = vmatprep.subr.bf16.mxu0 0
      %1621 = vmatpush1.bf16.msra.mxu0 %v1425
      %1622 = vmatprep.subr.bf16.mxu0 0
      %1623 = vmatpush1.bf16.msra.mxu0 %v1426
      %1624 = vmatprep.subr.bf16.mxu0 0
      %1625 = vmatpush1.bf16.msra.mxu0 %v1427
      %1626 = vmatprep.subr.bf16.mxu0 0
      %1627 = vmatpush1.bf16.msra.mxu0 %v1428
      %1628 = vmatprep.subr.bf16.mxu0 0
      %1629 = vmatpush1.bf16.msra.mxu0 %v1429
      %1630 = vmatprep.subr.bf16.mxu0 0
      %1631 = vmatpush1.bf16.msra.mxu0 %v1430
      %1632 = vmatprep.subr.bf16.mxu0 0
      %1633 = vmatpush1.bf16.msra.mxu0 0
      %1634 = vmatprep.subr.bf16.mxu0 0
      %1635 = vmatpush1.bf16.msra.mxu0 0
      %1636 = vmatprep.subr.bf16.mxu0 0
      %1637 = vmatpush1.bf16.msra.mxu0 0
      %1638 = vmatprep.subr.bf16.mxu0 0
      %1639 = vmatpush1.bf16.msra.mxu0 0
      %1640 = vmatprep.subr.bf16.mxu0 0
      %1641 = vmatpush1.bf16.msra.mxu0 0
      %1642 = vmatprep.subr.bf16.mxu0 0
      %1643 = vmatpush1.bf16.msra.mxu0 0
      %1644 = vmatprep.subr.bf16.mxu0 0
      %1645 = vmatpush1.bf16.msra.mxu0 0
      %1646 = vmatprep.subr.bf16.mxu0 0
      %1647 = vmatpush1.bf16.msra.mxu0 0
      %1648 = vmatprep.mubr.bf16.mxu0 0
      %1649 = vmatmul.mubr.bf16.gmra.mrb[0].mxu0 %v678
      %v1650 = vpop.f32.mrb[0].mxu0
      %v1651 = vadd.f32 %v1490, %v1650
      %v1652 = vpop.f32.mrb[0].mxu0
      %v1653 = vpop.f32.mrb[0].mxu0
      %v1654 = vadd.f32 %v1493, %v1653
      %v1655 = vpop.f32.mrb[0].mxu0
      %1656 = vmatprep.mubr.bf16.mxu0 0
      %1657 = vmatmul.mubr.bf16.gmra.mrb[0].mxu0 %v681
      %v1658 = vpop.f32.mrb[0].mxu0
      %v1659 = vadd.f32 %v1498, %v1658
      %v1660 = vpop.f32.mrb[0].mxu0
      %v1661 = vpop.f32.mrb[0].mxu0
      %v1662 = vadd.f32 %v1501, %v1661
      %v1663 = vpop.f32.mrb[0].mxu0
      %1664 = vmatprep.mubr.bf16.mxu0 0
      %1665 = vmatmul.mubr.bf16.gmra.mrb[0].mxu0 %v684
      %v1666 = vpop.f32.mrb[0].mxu0
      %v1667 = vadd.f32 %v1506, %v1666
      %v1668 = vpop.f32.mrb[0].mxu0
      %v1669 = vpop.f32.mrb[0].mxu0
      %v1670 = vadd.f32 %v1509, %v1669
      %v1671 = vpop.f32.mrb[0].mxu0
      %1672 = vmatprep.mubr.bf16.mxu0 0
      %1673 = vmatmul.mubr.bf16.gmra.mrb[0].mxu0 %v687
      %v1674 = vpop.f32.mrb[0].mxu0
      %v1675 = vadd.f32 %v1514, %v1674
      %v1676 = vpop.f32.mrb[0].mxu0
      %v1677 = vpop.f32.mrb[0].mxu0
      %v1678 = vadd.f32 %v1517, %v1677
      %v1679 = vpop.f32.mrb[0].mxu0
      %1680 = vmatprep.mubr.bf16.mxu0 0
      %1681 = vmatmul.mubr.bf16.gmra.mrb[0].mxu0 %v690
      %v1682 = vpop.f32.mrb[0].mxu0
      %v1683 = vadd.f32 %v1522, %v1682
      %v1684 = vpop.f32.mrb[0].mxu0
      %v1685 = vpop.f32.mrb[0].mxu0
      %v1686 = vadd.f32 %v1525, %v1685
      %v1687 = vpop.f32.mrb[0].mxu0
      %1688 = vmatprep.mubr.bf16.mxu0 0
      %1689 = vmatmul.mubr.bf16.gmra.mrb[0].mxu0 %v693
      %v1690 = vpop.f32.mrb[0].mxu0
      %v1691 = vadd.f32 %v1530, %v1690
      %v1692 = vpop.f32.mrb[0].mxu0
      %v1693 = vpop.f32.mrb[0].mxu0
      %v1694 = vadd.f32 %v1533, %v1693
      %v1695 = vpop.f32.mrb[0].mxu0
      %1696 = vmatprep.mubr.bf16.mxu0 0
      %1697 = vmatmul.mubr.bf16.gmra.mrb[0].mxu0 %v696
      %v1698 = vpop.f32.mrb[0].mxu0
      %v1699 = vadd.f32 %v1538, %v1698
      %v1700 = vpop.f32.mrb[0].mxu0
      %v1701 = vpop.f32.mrb[0].mxu0
      %v1702 = vadd.f32 %v1541, %v1701
      %v1703 = vpop.f32.mrb[0].mxu0
      %1704 = vmatprep.mubr.bf16.mxu0 0
      %1705 = vmatmul.mubr.bf16.gmra.mrb[0].mxu0 %v699
      %v1706 = vpop.f32.mrb[0].mxu0
      %v1707 = vadd.f32 %v1546, %v1706
      %v1708 = vpop.f32.mrb[0].mxu0
      %v1709 = vpop.f32.mrb[0].mxu0
      %v1710 = vadd.f32 %v1549, %v1709
      %v1711 = vpop.f32.mrb[0].mxu0
      %1712 = vmatprep.mubr.bf16.mxu0 0
      %1713 = vmatmul.mubr.bf16.gmra.mrb[0].mxu0 %v702
      %v1714 = vpop.f32.mrb[0].mxu0
      %v1715 = vadd.f32 %v1554, %v1714
      %v1716 = vpop.f32.mrb[0].mxu0
      %v1717 = vpop.f32.mrb[0].mxu0
      %v1718 = vadd.f32 %v1557, %v1717
      %v1719 = vpop.f32.mrb[0].mxu0
      %1720 = vmatprep.mubr.bf16.mxu0 0
      %1721 = vmatmul.mubr.bf16.gmra.mrb[0].mxu0 %v705
      %v1722 = vpop.f32.mrb[0].mxu0
      %v1723 = vadd.f32 %v1562, %v1722
      %v1724 = vpop.f32.mrb[0].mxu0
      %v1725 = vpop.f32.mrb[0].mxu0
      %v1726 = vadd.f32 %v1565, %v1725
      %v1727 = vpop.f32.mrb[0].mxu0
      %1728 = vmatprep.mubr.bf16.mxu0 0
      %1729 = vmatmul.mubr.bf16.gmra.mrb[0].mxu0 %v708
      %v1730 = vpop.f32.mrb[0].mxu0
      %v1731 = vadd.f32 %v1570, %v1730
      %v1732 = vpop.f32.mrb[0].mxu0
      %v1733 = vpop.f32.mrb[0].mxu0
      %v1734 = vadd.f32 %v1573, %v1733
      %v1735 = vpop.f32.mrb[0].mxu0
      %1736 = vmatprep.mubr.bf16.mxu0 0
      %1737 = vmatmul.mubr.bf16.gmra.mrb[0].mxu0 %v711
      %v1738 = vpop.f32.mrb[0].mxu0
      %v1739 = vadd.f32 %v1578, %v1738
      %v1740 = vpop.f32.mrb[0].mxu0
      %v1741 = vpop.f32.mrb[0].mxu0
      %v1742 = vadd.f32 %v1581, %v1741
      %v1743 = vpop.f32.mrb[0].mxu0
      %1744 = vmatprep.mubr.bf16.mxu0 0
      %1745 = vmatmul.mubr.bf16.gmra.mrb[0].mxu0 %v714
      %v1746 = vpop.f32.mrb[0].mxu0
      %v1747 = vadd.f32 %v1586, %v1746
      %v1748 = vpop.f32.mrb[0].mxu0
      %v1749 = vpop.f32.mrb[0].mxu0
      %v1750 = vadd.f32 %v1589, %v1749
      %v1751 = vpop.f32.mrb[0].mxu0
      %1752 = vmatprep.mubr.bf16.mxu0 0
      %1753 = vmatmul.mubr.bf16.gmra.mrb[0].mxu0 %v717
      %v1754 = vpop.f32.mrb[0].mxu0
      %v1755 = vadd.f32 %v1594, %v1754
      %v1756 = vpop.f32.mrb[0].mxu0
      %v1757 = vpop.f32.mrb[0].mxu0
      %v1758 = vadd.f32 %v1597, %v1757
      %v1759 = vpop.f32.mrb[0].mxu0
      %1760 = vmatprep.mubr.bf16.mxu0 0
      %1761 = vmatmul.mubr.bf16.gmra.mrb[0].mxu0 %v720
      %v1762 = vpop.f32.mrb[0].mxu0
      %v1763 = vadd.f32 %v1602, %v1762
      %v1764 = vpop.f32.mrb[0].mxu0
      %v1765 = vpop.f32.mrb[0].mxu0
      %v1766 = vadd.f32 %v1605, %v1765
      %v1767 = vpop.f32.mrb[0].mxu0
      %1768 = vmatprep.mubr.bf16.mxu0 0
      %1769 = vmatmul.mubr.bf16.gmra.mrb[0].mxu0 %v723
      %v1770 = vpop.f32.mrb[0].mxu0
      %v1771 = vadd.f32 %v1610, %v1770
      %v1772 = vpop.f32.mrb[0].mxu0
      %v1773 = vpop.f32.mrb[0].mxu0
      %v1774 = vadd.f32 %v1613, %v1773
      %v1775 = vpop.f32.mrb[0].mxu0
      %1776 = vdwg.mxu0
      %s1777 = scalar_lea.vmem %s210, 384
      %v1778 = vld [vmem:[%s1777] sm:$0xf]
      %v1779 = vld [vmem:[%s1777 + $0x4] sm:$0xf]
      %v1780 = vld [vmem:[%s1777 + $0x8] sm:$0xf]
      %v1781 = vld [vmem:[%s1777 + $0xc] sm:$0xf]
      %v1782 = vld [vmem:[%s1777 + $0x10] sm:$0xf]
      %v1783 = vld [vmem:[%s1777 + $0x14] sm:$0xf]
      %v1784 = vld [vmem:[%s1777 + $0x18] sm:$0xf]
      %v1785 = vld [vmem:[%s1777 + $0x1c] sm:$0xf]
      %v1786 = vld [vmem:[%s1777 + $0x20] sm:$0xf]
      %v1787 = vld [vmem:[%s1777 + $0x24] sm:$0xf]
      %v1788 = vld [vmem:[%s1777 + $0x28] sm:$0xf]
      %v1789 = vld [vmem:[%s1777 + $0x2c] sm:$0xf]
      %v1790 = vld [vmem:[%s1777 + $0x30] sm:$0xf]
      %v1791 = vld [vmem:[%s1777 + $0x34] sm:$0xf]
      %v1792 = vld [vmem:[%s1777 + $0x38] sm:$0xf]
      %v1793 = vld [vmem:[%s1777 + $0x3c] sm:$0xf]
      %v1794 = vld [vmem:[%s1777 + $0x40] sm:$0xf]
      %v1795 = vld [vmem:[%s1777 + $0x44] sm:$0xf]
      %v1796 = vld [vmem:[%s1777 + $0x48] sm:$0xf]
      %v1797 = vld [vmem:[%s1777 + $0x4c] sm:$0xf]
      %v1798 = vld [vmem:[%s1777 + $0x50] sm:$0xf]
      %v1799 = vld [vmem:[%s1777 + $0x54] sm:$0xf]
      %v1800 = vld [vmem:[%s1777 + $0x58] sm:$0xf]
      %v1801 = vld [vmem:[%s1777 + $0x5c] sm:$0xf]
      %v1802 = vld [vmem:[%s1777 + $0x60] sm:$0xf]
      %v1803 = vld [vmem:[%s1777 + $0x64] sm:$0xf]
      %v1804 = vld [vmem:[%s1777 + $0x68] sm:$0xf]
      %v1805 = vld [vmem:[%s1777 + $0x6c] sm:$0xf]
      %v1806 = vld [vmem:[%s1777 + $0x70] sm:$0xf]
      %v1807 = vld [vmem:[%s1777 + $0x74] sm:$0xf]
      %v1808 = vld [vmem:[%s1777 + $0x78] sm:$0xf]
      %v1809 = vld [vmem:[%s1777 + $0x7c] sm:$0xf]
      %v1810 = vld [vmem:[%s1777 + $0x80] sm:$0xf]
      %v1811 = vld [vmem:[%s1777 + $0x84] sm:$0xf]
      %v1812 = vld [vmem:[%s1777 + $0x88] sm:$0xf]
      %v1813 = vld [vmem:[%s1777 + $0x8c] sm:$0xf]
      %v1814 = vld [vmem:[%s1777 + $0x90] sm:$0xf]
      %v1815 = vld [vmem:[%s1777 + $0x94] sm:$0xf]
      %v1816 = vld [vmem:[%s1777 + $0x98] sm:$0xf]
      %v1817 = vld [vmem:[%s1777 + $0x9c] sm:$0xf]
      %v1818 = vld [vmem:[%s1777 + $0xa0] sm:$0xf]
      %v1819 = vld [vmem:[%s1777 + $0xa4] sm:$0xf]
      %v1820 = vld [vmem:[%s1777 + $0xa8] sm:$0xf]
      %v1821 = vld [vmem:[%s1777 + $0xac] sm:$0xf]
      %v1822 = vld [vmem:[%s1777 + $0xb0] sm:$0xf]
      %v1823 = vld [vmem:[%s1777 + $0xb4] sm:$0xf]
      %v1824 = vld [vmem:[%s1777 + $0xb8] sm:$0xf]
      %v1825 = vld [vmem:[%s1777 + $0xbc] sm:$0xf]
      %v1874 = vunpack.c.l.b16 %v1778
      %v1875 = vunpack.c.l.b16 %v1779
      %v1876 = vunpack.c.l.b16 %v1780
      %v1877 = vunpack.c.l.b16 %v1781
      %v1878 = vunpack.c.l.b16 %v1782
      %v1879 = vunpack.c.l.b16 %v1783
      %v1880 = vunpack.c.l.b16 %v1784
      %v1881 = vunpack.c.l.b16 %v1785
      %v1882 = vunpack.c.l.b16 %v1786
      %v1883 = vunpack.c.l.b16 %v1787
      %v1884 = vunpack.c.l.b16 %v1788
      %v1885 = vunpack.c.l.b16 %v1789
      %v1886 = vunpack.c.l.b16 %v1790
      %v1887 = vunpack.c.l.b16 %v1791
      %v1888 = vunpack.c.l.b16 %v1792
      %v1889 = vunpack.c.l.b16 %v1793
      %v1890 = vunpack.c.l.b16 %v1794
      %v1891 = vunpack.c.l.b16 %v1795
      %v1892 = vunpack.c.l.b16 %v1796
      %v1893 = vunpack.c.l.b16 %v1797
      %v1894 = vunpack.c.l.b16 %v1798
      %v1895 = vunpack.c.l.b16 %v1799
      %v1896 = vunpack.c.l.b16 %v1800
      %v1897 = vunpack.c.l.b16 %v1801
      %v1898 = vunpack.c.l.b16 %v1802
      %v1899 = vunpack.c.l.b16 %v1803
      %v1900 = vunpack.c.l.b16 %v1804
      %v1901 = vunpack.c.l.b16 %v1805
      %v1902 = vunpack.c.l.b16 %v1806
      %v1903 = vunpack.c.l.b16 %v1807
      %v1904 = vunpack.c.l.b16 %v1808
      %v1905 = vunpack.c.l.b16 %v1809
      %v1906 = vunpack.c.l.b16 %v1810
      %v1907 = vunpack.c.l.b16 %v1811
      %v1908 = vunpack.c.l.b16 %v1812
      %v1909 = vunpack.c.l.b16 %v1813
      %v1910 = vunpack.c.l.b16 %v1814
      %v1911 = vunpack.c.l.b16 %v1815
      %v1912 = vunpack.c.l.b16 %v1816
      %v1913 = vunpack.c.l.b16 %v1817
      %v1914 = vunpack.c.l.b16 %v1818
      %v1915 = vunpack.c.l.b16 %v1819
      %v1916 = vunpack.c.l.b16 %v1820
      %v1917 = vunpack.c.l.b16 %v1821
      %v1918 = vunpack.c.l.b16 %v1822
      %v1919 = vunpack.c.l.b16 %v1823
      %v1920 = vunpack.c.l.b16 %v1824
      %v1921 = vunpack.c.l.b16 %v1825
      %v1922 = vpack.c.b16 %v1875, %v1874
      %v1923 = vpack.c.b16 %v1877, %v1876
      %v1924 = vpack.c.b16 %v1879, %v1878
      %v1925 = vpack.c.b16 %v1881, %v1880
      %v1926 = vpack.c.b16 %v1883, %v1882
      %v1927 = vpack.c.b16 %v1885, %v1884
      %v1928 = vpack.c.b16 %v1887, %v1886
      %v1929 = vpack.c.b16 %v1889, %v1888
      %v1930 = vpack.c.b16 %v1891, %v1890
      %v1931 = vpack.c.b16 %v1893, %v1892
      %v1932 = vpack.c.b16 %v1895, %v1894
      %v1933 = vpack.c.b16 %v1897, %v1896
      %v1934 = vpack.c.b16 %v1899, %v1898
      %v1935 = vpack.c.b16 %v1901, %v1900
      %v1936 = vpack.c.b16 %v1903, %v1902
      %v1937 = vpack.c.b16 %v1905, %v1904
      %v1938 = vpack.c.b16 %v1907, %v1906
      %v1939 = vpack.c.b16 %v1909, %v1908
      %v1940 = vpack.c.b16 %v1911, %v1910
      %v1941 = vpack.c.b16 %v1913, %v1912
      %v1942 = vpack.c.b16 %v1915, %v1914
      %v1943 = vpack.c.b16 %v1917, %v1916
      %v1944 = vpack.c.b16 %v1919, %v1918
      %v1945 = vpack.c.b16 %v1921, %v1920
      %1970 = vmatprep.subr.bf16.mxu0 0
      %1971 = vmatpush1.bf16.msra.mxu0 %v1922
      %1972 = vmatprep.subr.bf16.mxu0 0
      %1973 = vmatpush1.bf16.msra.mxu0 %v1923
      %1974 = vmatprep.subr.bf16.mxu0 0
      %1975 = vmatpush1.bf16.msra.mxu0 %v1924
      %1976 = vmatprep.subr.bf16.mxu0 0
      %1977 = vmatpush1.bf16.msra.mxu0 %v1925
      %1978 = vmatprep.subr.bf16.mxu0 0
      %1979 = vmatpush1.bf16.msra.mxu0 %v1926
      %1980 = vmatprep.subr.bf16.mxu0 0
      %1981 = vmatpush1.bf16.msra.mxu0 %v1927
      %1982 = vmatprep.subr.bf16.mxu0 0
      %1983 = vmatpush1.bf16.msra.mxu0 %v1928
      %1984 = vmatprep.subr.bf16.mxu0 0
      %1985 = vmatpush1.bf16.msra.mxu0 %v1929
      %1986 = vmatprep.subr.bf16.mxu0 0
      %1987 = vmatpush1.bf16.msra.mxu0 %v1930
      %1988 = vmatprep.subr.bf16.mxu0 0
      %1989 = vmatpush1.bf16.msra.mxu0 %v1931
      %1990 = vmatprep.subr.bf16.mxu0 0
      %1991 = vmatpush1.bf16.msra.mxu0 %v1932
      %1992 = vmatprep.subr.bf16.mxu0 0
      %1993 = vmatpush1.bf16.msra.mxu0 %v1933
      %1994 = vmatprep.subr.bf16.mxu0 0
      %1995 = vmatpush1.bf16.msra.mxu0 %v1934
      %1996 = vmatprep.subr.bf16.mxu0 0
      %1997 = vmatpush1.bf16.msra.mxu0 %v1935
      %1998 = vmatprep.subr.bf16.mxu0 0
      %1999 = vmatpush1.bf16.msra.mxu0 %v1936
      %2000 = vmatprep.subr.bf16.mxu0 0
      %2001 = vmatpush1.bf16.msra.mxu0 %v1937
      %2002 = vmatprep.mubr.bf16.mxu0 %v476
      %2003 = vmatmul.mubr.bf16.gmra.mrb[0].mxu0 %v352
      %v2004 = vpop.f32.mrb[0].mxu0
      %v2005 = vadd.f32 0.0, %v2004
      %v2006 = vpop.f32.mrb[0].mxu0
      %v2007 = vpop.f32.mrb[0].mxu0
      %v2008 = vadd.f32 0.0, %v2007
      %v2009 = vpop.f32.mrb[0].mxu0
      %2010 = vmatprep.mubr.bf16.mxu0 %v488
      %2011 = vmatmul.mubr.bf16.gmra.mrb[0].mxu0 %v353
      %v2012 = vpop.f32.mrb[0].mxu0
      %v2013 = vadd.f32 0.0, %v2012
      %v2014 = vpop.f32.mrb[0].mxu0
      %v2015 = vpop.f32.mrb[0].mxu0
      %v2016 = vadd.f32 0.0, %v2015
      %v2017 = vpop.f32.mrb[0].mxu0
      %2018 = vmatprep.mubr.bf16.mxu0 %v500
      %2019 = vmatmul.mubr.bf16.gmra.mrb[0].mxu0 %v354
      %v2020 = vpop.f32.mrb[0].mxu0
      %v2021 = vadd.f32 0.0, %v2020
      %v2022 = vpop.f32.mrb[0].mxu0
      %v2023 = vpop.f32.mrb[0].mxu0
      %v2024 = vadd.f32 0.0, %v2023
      %v2025 = vpop.f32.mrb[0].mxu0
      %2026 = vmatprep.mubr.bf16.mxu0 %v512
      %2027 = vmatmul.mubr.bf16.gmra.mrb[0].mxu0 %v355
      %v2028 = vpop.f32.mrb[0].mxu0
      %v2029 = vadd.f32 0.0, %v2028
      %v2030 = vpop.f32.mrb[0].mxu0
      %v2031 = vpop.f32.mrb[0].mxu0
      %v2032 = vadd.f32 0.0, %v2031
      %v2033 = vpop.f32.mrb[0].mxu0
      %2034 = vmatprep.mubr.bf16.mxu0 %v524
      %2035 = vmatmul.mubr.bf16.gmra.mrb[0].mxu0 %v356
      %v2036 = vpop.f32.mrb[0].mxu0
      %v2037 = vadd.f32 0.0, %v2036
      %v2038 = vpop.f32.mrb[0].mxu0
      %v2039 = vpop.f32.mrb[0].mxu0
      %v2040 = vadd.f32 0.0, %v2039
      %v2041 = vpop.f32.mrb[0].mxu0
      %2042 = vmatprep.mubr.bf16.mxu0 %v536
      %2043 = vmatmul.mubr.bf16.gmra.mrb[0].mxu0 %v357
      %v2044 = vpop.f32.mrb[0].mxu0
      %v2045 = vadd.f32 0.0, %v2044
      %v2046 = vpop.f32.mrb[0].mxu0
      %v2047 = vpop.f32.mrb[0].mxu0
      %v2048 = vadd.f32 0.0, %v2047
      %v2049 = vpop.f32.mrb[0].mxu0
      %2050 = vmatprep.mubr.bf16.mxu0 %v548
      %2051 = vmatmul.mubr.bf16.gmra.mrb[0].mxu0 %v358
      %v2052 = vpop.f32.mrb[0].mxu0
      %v2053 = vadd.f32 0.0, %v2052
      %v2054 = vpop.f32.mrb[0].mxu0
      %v2055 = vpop.f32.mrb[0].mxu0
      %v2056 = vadd.f32 0.0, %v2055
      %v2057 = vpop.f32.mrb[0].mxu0
      %2058 = vmatprep.mubr.bf16.mxu0 %v560
      %2059 = vmatmul.mubr.bf16.gmra.mrb[0].mxu0 %v359
      %v2060 = vpop.f32.mrb[0].mxu0
      %v2061 = vadd.f32 0.0, %v2060
      %v2062 = vpop.f32.mrb[0].mxu0
      %v2063 = vpop.f32.mrb[0].mxu0
      %v2064 = vadd.f32 0.0, %v2063
      %v2065 = vpop.f32.mrb[0].mxu0
      %2066 = vmatprep.mubr.bf16.mxu0 %v572
      %2067 = vmatmul.mubr.bf16.gmra.mrb[0].mxu0 %v360
      %v2068 = vpop.f32.mrb[0].mxu0
      %v2069 = vadd.f32 0.0, %v2068
      %v2070 = vpop.f32.mrb[0].mxu0
      %v2071 = vpop.f32.mrb[0].mxu0
      %v2072 = vadd.f32 0.0, %v2071
      %v2073 = vpop.f32.mrb[0].mxu0
      %2074 = vmatprep.mubr.bf16.mxu0 %v584
      %2075 = vmatmul.mubr.bf16.gmra.mrb[0].mxu0 %v361
      %v2076 = vpop.f32.mrb[0].mxu0
      %v2077 = vadd.f32 0.0, %v2076
      %v2078 = vpop.f32.mrb[0].mxu0
      %v2079 = vpop.f32.mrb[0].mxu0
      %v2080 = vadd.f32 0.0, %v2079
      %v2081 = vpop.f32.mrb[0].mxu0
      %2082 = vmatprep.mubr.bf16.mxu0 %v596
      %2083 = vmatmul.mubr.bf16.gmra.mrb[0].mxu0 %v362
      %v2084 = vpop.f32.mrb[0].mxu0
      %v2085 = vadd.f32 0.0, %v2084
      %v2086 = vpop.f32.mrb[0].mxu0
      %v2087 = vpop.f32.mrb[0].mxu0
      %v2088 = vadd.f32 0.0, %v2087
      %v2089 = vpop.f32.mrb[0].mxu0
      %2090 = vmatprep.mubr.bf16.mxu0 %v608
      %2091 = vmatmul.mubr.bf16.gmra.mrb[0].mxu0 %v363
      %v2092 = vpop.f32.mrb[0].mxu0
      %v2093 = vadd.f32 0.0, %v2092
      %v2094 = vpop.f32.mrb[0].mxu0
      %v2095 = vpop.f32.mrb[0].mxu0
      %v2096 = vadd.f32 0.0, %v2095
      %v2097 = vpop.f32.mrb[0].mxu0
      %2098 = vmatprep.mubr.bf16.mxu0 %v620
      %2099 = vmatmul.mubr.bf16.gmra.mrb[0].mxu0 %v364
      %v2100 = vpop.f32.mrb[0].mxu0
      %v2101 = vadd.f32 0.0, %v2100
      %v2102 = vpop.f32.mrb[0].mxu0
      %v2103 = vpop.f32.mrb[0].mxu0
      %v2104 = vadd.f32 0.0, %v2103
      %v2105 = vpop.f32.mrb[0].mxu0
      %2106 = vmatprep.mubr.bf16.mxu0 %v632
      %2107 = vmatmul.mubr.bf16.gmra.mrb[0].mxu0 %v365
      %v2108 = vpop.f32.mrb[0].mxu0
      %v2109 = vadd.f32 0.0, %v2108
      %v2110 = vpop.f32.mrb[0].mxu0
      %v2111 = vpop.f32.mrb[0].mxu0
      %v2112 = vadd.f32 0.0, %v2111
      %v2113 = vpop.f32.mrb[0].mxu0
      %2114 = vmatprep.mubr.bf16.mxu0 %v644
      %2115 = vmatmul.mubr.bf16.gmra.mrb[0].mxu0 %v366
      %v2116 = vpop.f32.mrb[0].mxu0
      %v2117 = vadd.f32 0.0, %v2116
      %v2118 = vpop.f32.mrb[0].mxu0
      %v2119 = vpop.f32.mrb[0].mxu0
      %v2120 = vadd.f32 0.0, %v2119
      %v2121 = vpop.f32.mrb[0].mxu0
      %2122 = vmatprep.mubr.bf16.mxu0 %v656
      %2123 = vmatmul.mubr.bf16.gmra.mrb[0].mxu0 %v367
      %v2124 = vpop.f32.mrb[0].mxu0
      %v2125 = vadd.f32 0.0, %v2124
      %v2126 = vpop.f32.mrb[0].mxu0
      %v2127 = vpop.f32.mrb[0].mxu0
      %v2128 = vadd.f32 0.0, %v2127
      %v2129 = vpop.f32.mrb[0].mxu0
      %2130 = vdwg.mxu0
      %2131 = vmatprep.subr.bf16.mxu0 0
      %2132 = vmatpush1.bf16.msra.mxu0 %v1938
      %2133 = vmatprep.subr.bf16.mxu0 0
      %2134 = vmatpush1.bf16.msra.mxu0 %v1939
      %2135 = vmatprep.subr.bf16.mxu0 0
      %2136 = vmatpush1.bf16.msra.mxu0 %v1940
      %2137 = vmatprep.subr.bf16.mxu0 0
      %2138 = vmatpush1.bf16.msra.mxu0 %v1941
      %2139 = vmatprep.subr.bf16.mxu0 0
      %2140 = vmatpush1.bf16.msra.mxu0 %v1942
      %2141 = vmatprep.subr.bf16.mxu0 0
      %2142 = vmatpush1.bf16.msra.mxu0 %v1943
      %2143 = vmatprep.subr.bf16.mxu0 0
      %2144 = vmatpush1.bf16.msra.mxu0 %v1944
      %2145 = vmatprep.subr.bf16.mxu0 0
      %2146 = vmatpush1.bf16.msra.mxu0 %v1945
      %2147 = vmatprep.subr.bf16.mxu0 0
      %2148 = vmatpush1.bf16.msra.mxu0 0
      %2149 = vmatprep.subr.bf16.mxu0 0
      %2150 = vmatpush1.bf16.msra.mxu0 0
      %2151 = vmatprep.subr.bf16.mxu0 0
      %2152 = vmatpush1.bf16.msra.mxu0 0
      %2153 = vmatprep.subr.bf16.mxu0 0
      %2154 = vmatpush1.bf16.msra.mxu0 0
      %2155 = vmatprep.subr.bf16.mxu0 0
      %2156 = vmatpush1.bf16.msra.mxu0 0
      %2157 = vmatprep.subr.bf16.mxu0 0
      %2158 = vmatpush1.bf16.msra.mxu0 0
      %2159 = vmatprep.subr.bf16.mxu0 0
      %2160 = vmatpush1.bf16.msra.mxu0 0
      %2161 = vmatprep.subr.bf16.mxu0 0
      %2162 = vmatpush1.bf16.msra.mxu0 0
      %2163 = vmatprep.mubr.bf16.mxu0 0
      %2164 = vmatmul.mubr.bf16.gmra.mrb[0].mxu0 %v684
      %v2165 = vpop.f32.mrb[0].mxu0
      %v2166 = vadd.f32 %v2005, %v2165
      %v2167 = vpop.f32.mrb[0].mxu0
      %v2168 = vpop.f32.mrb[0].mxu0
      %v2169 = vadd.f32 %v2008, %v2168
      %v2170 = vpop.f32.mrb[0].mxu0
      %2171 = vmatprep.mubr.bf16.mxu0 0
      %2172 = vmatmul.mubr.bf16.gmra.mrb[0].mxu0 %v687
      %v2173 = vpop.f32.mrb[0].mxu0
      %v2174 = vadd.f32 %v2013, %v2173
      %v2175 = vpop.f32.mrb[0].mxu0
      %v2176 = vpop.f32.mrb[0].mxu0
      %v2177 = vadd.f32 %v2016, %v2176
      %v2178 = vpop.f32.mrb[0].mxu0
      %2179 = vmatprep.mubr.bf16.mxu0 0
      %2180 = vmatmul.mubr.bf16.gmra.mrb[0].mxu0 %v690
      %v2181 = vpop.f32.mrb[0].mxu0
      %v2182 = vadd.f32 %v2021, %v2181
      %v2183 = vpop.f32.mrb[0].mxu0
      %v2184 = vpop.f32.mrb[0].mxu0
      %v2185 = vadd.f32 %v2024, %v2184
      %v2186 = vpop.f32.mrb[0].mxu0
      %2187 = vmatprep.mubr.bf16.mxu0 0
      %2188 = vmatmul.mubr.bf16.gmra.mrb[0].mxu0 %v693
      %v2189 = vpop.f32.mrb[0].mxu0
      %v2190 = vadd.f32 %v2029, %v2189
      %v2191 = vpop.f32.mrb[0].mxu0
      %v2192 = vpop.f32.mrb[0].mxu0
      %v2193 = vadd.f32 %v2032, %v2192
      %v2194 = vpop.f32.mrb[0].mxu0
      %2195 = vmatprep.mubr.bf16.mxu0 0
      %2196 = vmatmul.mubr.bf16.gmra.mrb[0].mxu0 %v696
      %v2197 = vpop.f32.mrb[0].mxu0
      %v2198 = vadd.f32 %v2037, %v2197
      %v2199 = vpop.f32.mrb[0].mxu0
      %v2200 = vpop.f32.mrb[0].mxu0
      %v2201 = vadd.f32 %v2040, %v2200
      %v2202 = vpop.f32.mrb[0].mxu0
      %2203 = vmatprep.mubr.bf16.mxu0 0
      %2204 = vmatmul.mubr.bf16.gmra.mrb[0].mxu0 %v699
      %v2205 = vpop.f32.mrb[0].mxu0
      %v2206 = vadd.f32 %v2045, %v2205
      %v2207 = vpop.f32.mrb[0].mxu0
      %v2208 = vpop.f32.mrb[0].mxu0
      %v2209 = vadd.f32 %v2048, %v2208
      %v2210 = vpop.f32.mrb[0].mxu0
      %2211 = vmatprep.mubr.bf16.mxu0 0
      %2212 = vmatmul.mubr.bf16.gmra.mrb[0].mxu0 %v702
      %v2213 = vpop.f32.mrb[0].mxu0
      %v2214 = vadd.f32 %v2053, %v2213
      %v2215 = vpop.f32.mrb[0].mxu0
      %v2216 = vpop.f32.mrb[0].mxu0
      %v2217 = vadd.f32 %v2056, %v2216
      %v2218 = vpop.f32.mrb[0].mxu0
      %2219 = vmatprep.mubr.bf16.mxu0 0
      %2220 = vmatmul.mubr.bf16.gmra.mrb[0].mxu0 %v705
      %v2221 = vpop.f32.mrb[0].mxu0
      %v2222 = vadd.f32 %v2061, %v2221
      %v2223 = vpop.f32.mrb[0].mxu0
      %v2224 = vpop.f32.mrb[0].mxu0
      %v2225 = vadd.f32 %v2064, %v2224
      %v2226 = vpop.f32.mrb[0].mxu0
      %2227 = vmatprep.mubr.bf16.mxu0 0
      %2228 = vmatmul.mubr.bf16.gmra.mrb[0].mxu0 %v708
      %v2229 = vpop.f32.mrb[0].mxu0
      %v2230 = vadd.f32 %v2069, %v2229
      %v2231 = vpop.f32.mrb[0].mxu0
      %v2232 = vpop.f32.mrb[0].mxu0
      %v2233 = vadd.f32 %v2072, %v2232
      %v2234 = vpop.f32.mrb[0].mxu0
      %2235 = vmatprep.mubr.bf16.mxu0 0
      %2236 = vmatmul.mubr.bf16.gmra.mrb[0].mxu0 %v711
      %v2237 = vpop.f32.mrb[0].mxu0
      %v2238 = vadd.f32 %v2077, %v2237
      %v2239 = vpop.f32.mrb[0].mxu0
      %v2240 = vpop.f32.mrb[0].mxu0
      %v2241 = vadd.f32 %v2080, %v2240
      %v2242 = vpop.f32.mrb[0].mxu0
      %2243 = vmatprep.mubr.bf16.mxu0 0
      %2244 = vmatmul.mubr.bf16.gmra.mrb[0].mxu0 %v714
      %v2245 = vpop.f32.mrb[0].mxu0
      %v2246 = vadd.f32 %v2085, %v2245
      %v2247 = vpop.f32.mrb[0].mxu0
      %v2248 = vpop.f32.mrb[0].mxu0
      %v2249 = vadd.f32 %v2088, %v2248
      %v2250 = vpop.f32.mrb[0].mxu0
      %2251 = vmatprep.mubr.bf16.mxu0 0
      %2252 = vmatmul.mubr.bf16.gmra.mrb[0].mxu0 %v717
      %v2253 = vpop.f32.mrb[0].mxu0
      %v2254 = vadd.f32 %v2093, %v2253
      %v2255 = vpop.f32.mrb[0].mxu0
      %v2256 = vpop.f32.mrb[0].mxu0
      %v2257 = vadd.f32 %v2096, %v2256
      %v2258 = vpop.f32.mrb[0].mxu0
      %2259 = vmatprep.mubr.bf16.mxu0 0
      %2260 = vmatmul.mubr.bf16.gmra.mrb[0].mxu0 %v720
      %v2261 = vpop.f32.mrb[0].mxu0
      %v2262 = vadd.f32 %v2101, %v2261
      %v2263 = vpop.f32.mrb[0].mxu0
      %v2264 = vpop.f32.mrb[0].mxu0
      %v2265 = vadd.f32 %v2104, %v2264
      %v2266 = vpop.f32.mrb[0].mxu0
      %2267 = vmatprep.mubr.bf16.mxu0 0
      %2268 = vmatmul.mubr.bf16.gmra.mrb[0].mxu0 %v723
      %v2269 = vpop.f32.mrb[0].mxu0
      %v2270 = vadd.f32 %v2109, %v2269
      %v2271 = vpop.f32.mrb[0].mxu0
      %v2272 = vpop.f32.mrb[0].mxu0
      %v2273 = vadd.f32 %v2112, %v2272
      %v2274 = vpop.f32.mrb[0].mxu0
      %2275 = vmatprep.mubr.bf16.mxu0 0
      %2276 = vmatmul.mubr.bf16.gmra.mrb[0].mxu0 %v726
      %v2277 = vpop.f32.mrb[0].mxu0
      %v2278 = vadd.f32 %v2117, %v2277
      %v2279 = vpop.f32.mrb[0].mxu0
      %v2280 = vpop.f32.mrb[0].mxu0
      %v2281 = vadd.f32 %v2120, %v2280
      %v2282 = vpop.f32.mrb[0].mxu0
      %2283 = vmatprep.mubr.bf16.mxu0 0
      %2284 = vmatmul.mubr.bf16.gmra.mrb[0].mxu0 %v729
      %v2285 = vpop.f32.mrb[0].mxu0
      %v2286 = vadd.f32 %v2125, %v2285
      %v2287 = vpop.f32.mrb[0].mxu0
      %v2288 = vpop.f32.mrb[0].mxu0
      %v2289 = vadd.f32 %v2128, %v2288
      %v2290 = vpop.f32.mrb[0].mxu0
      %2291 = vdwg.mxu0
      %v2292 = vadd.f32 %v1651, %v2166
      %v2293 = vadd.f32 %v1654, %v2169
      %v2294 = vadd.f32 %v1659, %v2174
      %v2295 = vadd.f32 %v1662, %v2177
      %v2296 = vadd.f32 %v1667, %v2182
      %v2297 = vadd.f32 %v1670, %v2185
      %v2298 = vadd.f32 %v1675, %v2190
      %v2299 = vadd.f32 %v1678, %v2193
      %v2300 = vadd.f32 %v1683, %v2198
      %v2301 = vadd.f32 %v1686, %v2201
      %v2302 = vadd.f32 %v1691, %v2206
      %v2303 = vadd.f32 %v1694, %v2209
      %v2304 = vadd.f32 %v1699, %v2214
      %v2305 = vadd.f32 %v1702, %v2217
      %v2306 = vadd.f32 %v1707, %v2222
      %v2307 = vadd.f32 %v1710, %v2225
      %v2308 = vadd.f32 %v1715, %v2230
      %v2309 = vadd.f32 %v1718, %v2233
      %v2310 = vadd.f32 %v1723, %v2238
      %v2311 = vadd.f32 %v1726, %v2241
      %v2312 = vadd.f32 %v1731, %v2246
      %v2313 = vadd.f32 %v1734, %v2249
      %v2314 = vadd.f32 %v1739, %v2254
      %v2315 = vadd.f32 %v1742, %v2257
      %v2316 = vadd.f32 %v1747, %v2262
      %v2317 = vadd.f32 %v1750, %v2265
      %v2318 = vadd.f32 %v1755, %v2270
      %v2319 = vadd.f32 %v1758, %v2273
      %v2320 = vadd.f32 %v1763, %v2278
      %v2321 = vadd.f32 %v1766, %v2281
      %v2322 = vadd.f32 %v1771, %v2286
      %v2323 = vadd.f32 %v1774, %v2289
      %v2325 = vlaneseq
      %v2326 = vshrl.u32 %v2325, 7
      %v2327 = vsub.s32 0, %v2326
      %v2328 = vrot.slane %v223, %v2327
      %v2330 = vadd.f32 %v2292, %v2328
      %v2331 = vadd.f32 %v2293, %v2328
      %v2332 = vadd.f32 %v2294, %v2328
      %v2333 = vadd.f32 %v2295, %v2328
      %v2334 = vadd.f32 %v2296, %v2328
      %v2335 = vadd.f32 %v2297, %v2328
      %v2336 = vadd.f32 %v2298, %v2328
      %v2337 = vadd.f32 %v2299, %v2328
      %v2338 = vadd.f32 %v2300, %v2328
      %v2339 = vadd.f32 %v2301, %v2328
      %v2340 = vadd.f32 %v2302, %v2328
      %v2341 = vadd.f32 %v2303, %v2328
      %v2342 = vadd.f32 %v2304, %v2328
      %v2343 = vadd.f32 %v2305, %v2328
      %v2344 = vadd.f32 %v2306, %v2328
      %v2345 = vadd.f32 %v2307, %v2328
      %v2346 = vadd.f32 %v2308, %v2328
      %v2347 = vadd.f32 %v2309, %v2328
      %v2348 = vadd.f32 %v2310, %v2328
      %v2349 = vadd.f32 %v2311, %v2328
      %v2350 = vadd.f32 %v2312, %v2328
      %v2351 = vadd.f32 %v2313, %v2328
      %v2352 = vadd.f32 %v2314, %v2328
      %v2353 = vadd.f32 %v2315, %v2328
      %v2354 = vadd.f32 %v2316, %v2328
      %v2355 = vadd.f32 %v2317, %v2328
      %v2356 = vadd.f32 %v2318, %v2328
      %v2357 = vadd.f32 %v2319, %v2328
      %v2358 = vadd.f32 %v2320, %v2328
      %v2359 = vadd.f32 %v2321, %v2328
      %v2360 = vadd.f32 %v2322, %v2328
      %v2361 = vadd.f32 %v2323, %v2328
      %v2362 = vmax.f32 %v2330, 0.0
      %v2363 = vmax.f32 %v2331, 0.0
      %v2364 = vmax.f32 %v2332, 0.0
      %v2365 = vmax.f32 %v2333, 0.0
      %v2366 = vmax.f32 %v2334, 0.0
      %v2367 = vmax.f32 %v2335, 0.0
      %v2368 = vmax.f32 %v2336, 0.0
      %v2369 = vmax.f32 %v2337, 0.0
      %v2370 = vmax.f32 %v2338, 0.0
      %v2371 = vmax.f32 %v2339, 0.0
      %v2372 = vmax.f32 %v2340, 0.0
      %v2373 = vmax.f32 %v2341, 0.0
      %v2374 = vmax.f32 %v2342, 0.0
      %v2375 = vmax.f32 %v2343, 0.0
      %v2376 = vmax.f32 %v2344, 0.0
      %v2377 = vmax.f32 %v2345, 0.0
      %v2378 = vmax.f32 %v2346, 0.0
      %v2379 = vmax.f32 %v2347, 0.0
      %v2380 = vmax.f32 %v2348, 0.0
      %v2381 = vmax.f32 %v2349, 0.0
      %v2382 = vmax.f32 %v2350, 0.0
      %v2383 = vmax.f32 %v2351, 0.0
      %v2384 = vmax.f32 %v2352, 0.0
      %v2385 = vmax.f32 %v2353, 0.0
      %v2386 = vmax.f32 %v2354, 0.0
      %v2387 = vmax.f32 %v2355, 0.0
      %v2388 = vmax.f32 %v2356, 0.0
      %v2389 = vmax.f32 %v2357, 0.0
      %v2390 = vmax.f32 %v2358, 0.0
      %v2391 = vmax.f32 %v2359, 0.0
      %v2392 = vmax.f32 %v2360, 0.0
      %v2393 = vmax.f32 %v2361, 0.0
      %2394 = vst [vmem:[%s221] sm:$0xff] %v2362
      %2395 = vst [vmem:[%s221 + $0x8] sm:$0xff] %v2363
      %2396 = vst [vmem:[%s221 + $0x10] sm:$0xff] %v2364
      %2397 = vst [vmem:[%s221 + $0x18] sm:$0xff] %v2365
      %2398 = vst [vmem:[%s221 + $0x20] sm:$0xff] %v2366
      %2399 = vst [vmem:[%s221 + $0x28] sm:$0xff] %v2367
      %2400 = vst [vmem:[%s221 + $0x30] sm:$0xff] %v2368
      %2401 = vst [vmem:[%s221 + $0x38] sm:$0xff] %v2369
      %2402 = vst [vmem:[%s221 + $0x40] sm:$0xff] %v2370
      %2403 = vst [vmem:[%s221 + $0x48] sm:$0xff] %v2371
      %2404 = vst [vmem:[%s221 + $0x50] sm:$0xff] %v2372
      %2405 = vst [vmem:[%s221 + $0x58] sm:$0xff] %v2373
      %2406 = vst [vmem:[%s221 + $0x60] sm:$0xff] %v2374
      %2407 = vst [vmem:[%s221 + $0x68] sm:$0xff] %v2375
      %2408 = vst [vmem:[%s221 + $0x70] sm:$0xff] %v2376
      %2409 = vst [vmem:[%s221 + $0x78] sm:$0xff] %v2377
      %2410 = vst [vmem:[%s221 + $0x80] sm:$0xff] %v2378
      %2411 = vst [vmem:[%s221 + $0x88] sm:$0xff] %v2379
      %2412 = vst [vmem:[%s221 + $0x90] sm:$0xff] %v2380
      %2413 = vst [vmem:[%s221 + $0x98] sm:$0xff] %v2381
      %2414 = vst [vmem:[%s221 + $0xa0] sm:$0xff] %v2382
      %2415 = vst [vmem:[%s221 + $0xa8] sm:$0xff] %v2383
      %2416 = vst [vmem:[%s221 + $0xb0] sm:$0xff] %v2384
      %2417 = vst [vmem:[%s221 + $0xb8] sm:$0xff] %v2385
      %2418 = vst [vmem:[%s221 + $0xc0] sm:$0xff] %v2386
      %2419 = vst [vmem:[%s221 + $0xc8] sm:$0xff] %v2387
      %2420 = vst [vmem:[%s221 + $0xd0] sm:$0xff] %v2388
      %2421 = vst [vmem:[%s221 + $0xd8] sm:$0xff] %v2389
      %2422 = vst [vmem:[%s221 + $0xe0] sm:$0xff] %v2390
      %2423 = vst [vmem:[%s221 + $0xe8] sm:$0xff] %v2391
      %2424 = vst [vmem:[%s221 + $0xf0] sm:$0xff] %v2392
      %2425 = vst [vmem:[%s221 + $0xf8] sm:$0xff] %v2393
      %p2426 = scmp.lt.s32.totalorder %s19, 1
      %s2427 = scalar_select %p2426, %s19, 1
      %p2428 = scmp.lt.s32.totalorder %s18, 0
      %s2429 = scalar_select %p2428, %s18, 0
      %s2430 = smul.addr %s2427, 32
      %s2431 = sadd.s32 %s2429, %s2430
      %s2432 = smul.addr %s2431, 8
      %s2433 = scalar_lea.vmem %s3, %s2432
      // Predicated region
      $region33: #{repvgg_pallas.1} parent=31 // pred_check
        %p2434 = pneg %p124
      $region34: #{repvgg_pallas.1} parent=31 // pred_check_branch
        %2436 = sbr.rel (%p2434) target = $region36
      $region35: #{repvgg_pallas.1} parent=31 // pred_region
        _
      $region36: #{repvgg_pallas.1} parent=31 // pred_fallthru
        _
    $region32: #{repvgg_pallas.1} parent=5 // pred_fallthru
      _
    %p2437 = scmp.le.s32.totalorder 2, %s9
    // Predicated region
    $region37: #{repvgg_pallas.1} parent=5 // pred_check
      %p2438 = pneg %p2437
    $region38: #{repvgg_pallas.1} parent=5 // pred_check_branch
      %2440 = sbr.rel (%p2438) target = $region40
    $region39: #{repvgg_pallas.1} parent=5 // pred_region
      %s2441 = ssub.s32 %s9, 2
      // Predicated region
      $region41: #{repvgg_pallas.1} parent=39 // pred_check
        %p2442 = pneg %p130
      $region42: #{repvgg_pallas.1} parent=39 // pred_check_branch
        %2444 = sbr.rel (%p2442) target = $region44
      $region43: #{repvgg_pallas.1} parent=39 // pred_region
        %p2445 = scmp.lt.s32.totalorder %s21, 1
        %s2446 = scalar_select %p2445, %s21, 1
        %p2447 = scmp.lt.s32.totalorder %s20, 0
        %s2448 = scalar_select %p2447, %s20, 0
        %s2449 = smul.addr %s2446, 32
        %s2450 = sadd.s32 %s2448, %s2449
        %s2451 = smul.addr %s2450, 8
        %s2452 = scalar_lea.vmem %s3, %s2451
      $region44: #{repvgg_pallas.1} parent=39 // pred_fallthru
        _
    $region40: #{repvgg_pallas.1} parent=5 // pred_fallthru
      _
  $region6: #{repvgg_pallas.1} parent=0 // loop_footer
    %s13 = sadd.s32 1, %s9
  $region7: #{repvgg_pallas.1} parent=0 // loop_footer_branch
    %8 = sbr.rel target = $region3
  $region8: #{repvgg_pallas.1} parent=0 // loop_exit
    _

</llo_original>
